<compile_context>
chip_gen: v7x
topology: tpu7x:2x2x1
jax: 0.10.0
libtpu: 0.0.40
codegen_flags: <defaults>
</compile_context>

<pallas_src>
import math

import jax
import jax.numpy as jnp
from jax.experimental import pallas as pl
from jax.experimental.pallas import tpu as pltpu  # noqa: F401  (TPU backend)

# ------------------------------ config --------------------------------------
B = 2            # batch
S = 8            # sequence length
IN_SIZE = 16     # input_size
D = 32           # d_model
H = 4            # heads
DK = D // H      # per-head dim
HS = H * S       # fused head*key lane axis of the score tensor
N_LAYERS = 2     # N encoder layers
EPS = 1e-5
NEG_INF = -1000000000.0

# MXU ingest dtype (review item 4).  Set to jnp.float32 for bit-level parity
# with the f32 PyTorch reference; accumulation is always f32.
MATMUL_DTYPE = jnp.bfloat16

# Reference nn.GELU() is exact (erf).  approximate=True moves the transcendental
# to the otherwise-idle EUP slot (review item 5) at a small (~1e-3) deviation.
GELU_APPROX = True


# ------------------------------ helpers --------------------------------------
def _layernorm(x, w, b):
    # PyTorch nn.LayerNorm semantics: biased variance over last dim, eps=1e-5.
    mu = jnp.mean(x, axis=-1, keepdims=True)
    var = jnp.mean((x - mu) ** 2, axis=-1, keepdims=True)
    return (x - mu) * jax.lax.rsqrt(var + EPS) * w + b


def _dot(x, w, b=None):
    # MXU matmul: low-precision ingest (w already MATMUL_DTYPE), f32 accumulate.
    y = jnp.dot(x.astype(w.dtype), w, preferred_element_type=jnp.float32)
    return y if b is None else y + b


# ------------------- single fused kernel: full forward -----------------------
def encoder_fwd_kernel(src_ref, maskt_ref, pe_ref, blkmask_ref, segones_ref,
                       fc1w_ref, fc1b_ref, fc2w_ref, fc2b_ref,
                       fc3w_ref, fc3b_ref,
                       ln1w_ref, ln1b_ref, wq_ref, wk_ref, wv_ref,
                       fcw_ref, fcb_ref,
                       ln2w_ref, ln2b_ref, ffw1_ref, ffb1_ref,
                       ffw2_ref, ffb2_ref,
                       normw_ref, normb_ref,
                       out_ref):
    # ---- input MLP: FC3(relu(FC2(relu(FC1(src))))) ----
    x = _dot(src_ref[...], fc1w_ref[...], fc1b_ref[...])
    x = _dot(jax.nn.relu(x), fc2w_ref[...], fc2b_ref[...])
    x = _dot(jax.nn.relu(x), fc3w_ref[...], fc3b_ref[...])          # (B*S, D) f32

    # ---- positional encoding (precomputed additive table) ----
    x = x + pe_ref[...]

    # ---- hoisted once for all layers ----
    keep = maskt_ref[...] != 0          # (B*S, H*S) bool, mask==0 -> masked out
    blkmask = blkmask_ref[...]          # (H*S, D)  0/1: row j keeps head j//S cols
    seg_ones = segones_ref[...]         # (H*S, H*S) 0/1: same-head indicator

    # ---- N_LAYERS pre-norm encoder layers (static unroll, weights in VMEM) ----
    for l in range(N_LAYERS):
        # === self-attention branch: x = x + FC(MHA(LN1(x))) ===
        x2 = _layernorm(x, ln1w_ref[l], ln1b_ref[l])                 # (B*S, D)
        # projections (no bias); 1/sqrt(d_k) already folded into Wq at init
        q = _dot(x2, wq_ref[l]).reshape(B, S, D).astype(MATMUL_DTYPE)
        k = _dot(x2, wk_ref[l]).reshape(B, S, D)
        v = _dot(x2, wv_ref[l]).reshape(B, S, D)

        # head-block expansion: (B, S, D) -> (B, H*S, D); row block h keeps only
        # head h's feature columns.  Replaces all per-head lane slicing/concat
        # (XLU relayouts) with 2 sublane copies + 1 VPU mask-multiply each.
        kb = (jnp.concatenate([k] * H, axis=1) * blkmask).astype(MATMUL_DTYPE)
        vb = (jnp.concatenate([v] * H, axis=1) * blkmask).astype(MATMUL_DTYPE)

        # scores for all heads at once: column block h of (B, S, H*S) = Q_h @ K_h^T
        s = jnp.einsum('bqd,bjd->bqj', q, kb,
                       preferred_element_type=jnp.float32).reshape(B * S, HS)
        s = jnp.where(keep, s, NEG_INF)        # masked_fill(mask == 0, -1e9)

        # per-head softmax: per-row max is a constant shift within each S-wide
        # segment, so the per-head result matches the reference softmax.
        s = s - jnp.max(s, axis=-1, keepdims=True)
        p = jnp.exp(s)
        seg = jnp.dot(p, seg_ones,
                      preferred_element_type=jnp.float32)            # segment sums
        p = p * pl.reciprocal(seg, approx=True)

        # context: heads land in their correct column blocks -> already concat'ed
        ctx = jnp.einsum('bqj,bjd->bqd',
                         p.reshape(B, S, HS).astype(MATMUL_DTYPE), vb,
                         preferred_element_type=jnp.float32).reshape(B * S, D)
        x = x + _dot(ctx, fcw_ref[l], fcb_ref[l])

        # === feed-forward branch: x = x + FFN(LN2(x)) ===
        x2 = _layernorm(x, ln2w_ref[l], ln2b_ref[l])
        hdn = _dot(x2, ffw1_ref[l], ffb1_ref[l])
        hdn = jax.nn.gelu(hdn, approximate=GELU_APPROX)
        x = x + _dot(hdn, ffw2_ref[l], ffb2_ref[l])

    # ---- final LayerNorm ----
    out_ref[...] = _layernorm(x, normw_ref[...], normb_ref[...])


def _full_spec(a):
    # whole-array VMEM block (no grid)
    return pl.BlockSpec(a.shape, lambda: (0,) * a.ndim)


def encoder_forward(src, mask, params):
    # src: (B, S, IN_SIZE); mask: (B, S, S) (0 = masked out)
    src2d = src.reshape(B * S, IN_SIZE).astype(jnp.float32)
    # Layout plumbing only (review items 2/9): int32 mask, tiled once to the
    # kernel's (B*S, H*S) score layout; compare done once inside the kernel.
    mask_t = jnp.tile(mask.astype(jnp.int32), (1, 1, H)).reshape(B * S, HS)
    args = [
        src2d, mask_t, params["pe2d"], params["head_blockmask"], params["seg_ones"],
        params["fc1_w"], params["fc1_b"],
        params["fc2_w"], params["fc2_b"],
        params["fc3_w"], params["fc3_b"],
        params["ln1_w"], params["ln1_b"],
        params["wq"], params["wk"], params["wv"],
        params["fc_w"], params["fc_b"],
        params["ln2_w"], params["ln2_b"],
        params["ff_w1"], params["ff_b1"],
        params["ff_w2"], params["ff_b2"],
        params["norm_w"], params["norm_b"],
    ]
    out2d = pl.pallas_call(
        encoder_fwd_kernel,
        out_shape=jax.ShapeDtypeStruct((B * S, D), jnp.float32),
        in_specs=[_full_spec(a) for a in args],
        out_specs=pl.BlockSpec((B * S, D), lambda: (0, 0)),
        # Single-shot, fully VMEM-resident: no grid.  TODO(synk): if B*S / D scale
        # up, add a ("parallel",) row-block grid (uses v7x's second TensorCore) and
        # present a lane-dense (multiple-of-128) output slab; at this size the
        # per-step overhead and masked 32-lane stores are negligible.
    )(*args)
    return out2d.reshape(B, S, D)


encoder_forward_jit = jax.jit(encoder_forward)


# --------------------------- parameter init ----------------------------------
def sinusoidal_pe(seq_len, d_model):
    pos = jnp.arange(seq_len, dtype=jnp.float32)[:, None]
    i = jnp.arange(0, d_model, 2, dtype=jnp.float32)[None, :]
    angle = pos / jnp.power(10000.0, i / d_model)
    pe = jnp.zeros((seq_len, d_model), jnp.float32)
    pe = pe.at[:, 0::2].set(jnp.sin(angle))
    pe = pe.at[:, 1::2].set(jnp.cos(angle))
    return pe


def init_params(key):
    ks = iter(jax.random.split(key, 64))
    rnd = lambda shape, scale=0.05: (
        scale * jax.random.normal(next(ks), shape, dtype=jnp.float32))
    mm = lambda shape: rnd(shape).astype(MATMUL_DTYPE)

    # constant head-block selectors for the fused attention (computed once)
    j = jnp.arange(HS)
    c = jnp.arange(D)
    head_blockmask = (j[:, None] // S == c[None, :] // DK).astype(jnp.float32)  # (HS, D)
    seg_ones = (j[:, None] // S == j[None, :] // S).astype(jnp.float32)         # (HS, HS)

    params = {
        # input MLP
        "fc1_w": mm((IN_SIZE, 3 * D)), "fc1_b": rnd((1, 3 * D)),
        "fc2_w": mm((3 * D, 3 * D)),   "fc2_b": rnd((1, 3 * D)),
        "fc3_w": mm((3 * D, D)),       "fc3_b": rnd((1, D)),
        # per-layer weights, stacked along a leading N_LAYERS axis
        "ln1_w": jnp.ones((N_LAYERS, 1, D), jnp.float32),
        "ln1_b": jnp.zeros((N_LAYERS, 1, D), jnp.float32),
        # q/k/v have NO bias; 1/sqrt(d_k) folded into Wq at init (review item 3)
        "wq": (rnd((N_LAYERS, D, D)) / math.sqrt(DK)).astype(MATMUL_DTYPE),
        "wk": mm((N_LAYERS, D, D)),
        "wv": mm((N_LAYERS, D, D)),
        "fc_w": mm((N_LAYERS, D, D)), "fc_b": rnd((N_LAYERS, 1, D)),
        "ln2_w": jnp.ones((N_LAYERS, 1, D), jnp.float32),
        "ln2_b": jnp.zeros((N_LAYERS, 1, D), jnp.float32),
        "ff_w1": mm((N_LAYERS, D, 4 * D)), "ff_b1": rnd((N_LAYERS, 1, 4 * D)),
        "ff_w2": mm((N_LAYERS, 4 * D, D)), "ff_b2": rnd((N_LAYERS, 1, D)),
        # final LayerNorm
        "norm_w": jnp.ones((1, D), jnp.float32),
        "norm_b": jnp.zeros((1, D), jnp.float32),
        # TODO(synk): the reference passes `pe` as an external module; modeled here
        # as a standard additive sinusoidal table precomputed and tiled to (B*S, D).
        "pe2d": jnp.tile(sinusoidal_pe(S, D), (B, 1)),
        # fused-head attention constants
        "head_blockmask": head_blockmask,
        "seg_ones": seg_ones,
    }
    return params


if __name__ == "__main__":
    key = jax.random.PRNGKey(0)
    k_src, k_par = jax.random.split(key)
    src = jax.random.normal(k_src, (B, S, IN_SIZE), dtype=jnp.float32)
    mask = jnp.ones((B, S, S), dtype=jnp.int32)   # all positions visible
    params = init_params(k_par)

    out = jax.block_until_ready(encoder_forward_jit(src, mask, params))
    assert out.shape == (B, S, D)
    assert bool(jnp.all(jnp.isfinite(out)))
    print("KERNEL_OK")
</pallas_src>

<mosaic_0001>
module attributes {stable_mosaic.version = 11 : i64} {
  func.func @encoder_fwd_kernel(%arg0: memref<16x16xf32, #tpu.memory_space<vmem>>, %arg1: memref<16x32xi32, #tpu.memory_space<vmem>>, %arg2: memref<16x32xf32, #tpu.memory_space<vmem>>, %arg3: memref<32x32xf32, #tpu.memory_space<vmem>>, %arg4: memref<32x32xf32, #tpu.memory_space<vmem>>, %arg5: memref<16x96xbf16, #tpu.memory_space<vmem>>, %arg6: memref<1x96xf32, #tpu.memory_space<vmem>>, %arg7: memref<96x96xbf16, #tpu.memory_space<vmem>>, %arg8: memref<1x96xf32, #tpu.memory_space<vmem>>, %arg9: memref<96x32xbf16, #tpu.memory_space<vmem>>, %arg10: memref<1x32xf32, #tpu.memory_space<vmem>>, %arg11: memref<2x1x32xf32, #tpu.memory_space<vmem>>, %arg12: memref<2x1x32xf32, #tpu.memory_space<vmem>>, %arg13: memref<2x32x32xbf16, #tpu.memory_space<vmem>>, %arg14: memref<2x32x32xbf16, #tpu.memory_space<vmem>>, %arg15: memref<2x32x32xbf16, #tpu.memory_space<vmem>>, %arg16: memref<2x32x32xbf16, #tpu.memory_space<vmem>>, %arg17: memref<2x1x32xf32, #tpu.memory_space<vmem>>, %arg18: memref<2x1x32xf32, #tpu.memory_space<vmem>>, %arg19: memref<2x1x32xf32, #tpu.memory_space<vmem>>, %arg20: memref<2x32x128xbf16, #tpu.memory_space<vmem>>, %arg21: memref<2x1x128xf32, #tpu.memory_space<vmem>>, %arg22: memref<2x128x32xbf16, #tpu.memory_space<vmem>>, %arg23: memref<2x1x32xf32, #tpu.memory_space<vmem>>, %arg24: memref<1x32xf32, #tpu.memory_space<vmem>>, %arg25: memref<1x32xf32, #tpu.memory_space<vmem>>, %arg26: memref<16x32xf32, #tpu.memory_space<vmem>>) attributes {dimension_semantics = [], scalar_prefetch = 0 : i64, scratch_operands = 0 : i64, tpu.core_type = #tpu.core_type<tc>} {
    %c0 = arith.constant 0 : index
    %c0_0 = arith.constant 0 : index
    %0 = vector.load %arg0[%c0, %c0_0] : memref<16x16xf32, #tpu.memory_space<vmem>>, vector<16x16xf32>
    %c0_1 = arith.constant 0 : index
    %c0_2 = arith.constant 0 : index
    %1 = vector.load %arg5[%c0_1, %c0_2] : memref<16x96xbf16, #tpu.memory_space<vmem>>, vector<16x96xbf16>
    %c0_3 = arith.constant 0 : index
    %c0_4 = arith.constant 0 : index
    %2 = vector.load %arg6[%c0_3, %c0_4] : memref<1x96xf32, #tpu.memory_space<vmem>>, vector<1x96xf32>
    %3 = arith.truncf %0 : vector<16x16xf32> to vector<16x16xbf16>
    %cst = arith.constant dense<0.000000e+00> : vector<16x96xf32>
    %4 = tpu.matmul %3, %1, %cst {dimension_numbers = #tpu.dot_dimension_numbers<[1], [0], [0], [1], [0, 0, 1, 1], [], []>} : vector<16x16xbf16>, vector<16x96xbf16>, vector<16x96xf32> -> vector<16x96xf32>
    %5 = vector.broadcast %2 : vector<1x96xf32> to vector<16x96xf32>
    %6 = arith.addf %4, %5 : vector<16x96xf32>
    %cst_5 = arith.constant 0.000000e+00 : f32
    %7 = vector.broadcast %cst_5 : f32 to vector<16x96xf32>
    %8 = arith.maximumf %6, %7 : vector<16x96xf32>
    %c0_6 = arith.constant 0 : index
    %c0_7 = arith.constant 0 : index
    %9 = vector.load %arg7[%c0_6, %c0_7] : memref<96x96xbf16, #tpu.memory_space<vmem>>, vector<96x96xbf16>
    %c0_8 = arith.constant 0 : index
    %c0_9 = arith.constant 0 : index
    %10 = vector.load %arg8[%c0_8, %c0_9] : memref<1x96xf32, #tpu.memory_space<vmem>>, vector<1x96xf32>
    %11 = arith.truncf %8 : vector<16x96xf32> to vector<16x96xbf16>
    %cst_10 = arith.constant dense<0.000000e+00> : vector<16x96xf32>
    %12 = tpu.matmul %11, %9, %cst_10 {dimension_numbers = #tpu.dot_dimension_numbers<[1], [0], [0], [1], [0, 0, 1, 1], [], []>} : vector<16x96xbf16>, vector<96x96xbf16>, vector<16x96xf32> -> vector<16x96xf32>
    %13 = vector.broadcast %10 : vector<1x96xf32> to vector<16x96xf32>
    %14 = arith.addf %12, %13 : vector<16x96xf32>
    %cst_11 = arith.constant 0.000000e+00 : f32
    %15 = vector.broadcast %cst_11 : f32 to vector<16x96xf32>
    %16 = arith.maximumf %14, %15 : vector<16x96xf32>
    %c0_12 = arith.constant 0 : index
    %c0_13 = arith.constant 0 : index
    %17 = vector.load %arg9[%c0_12, %c0_13] : memref<96x32xbf16, #tpu.memory_space<vmem>>, vector<96x32xbf16>
    %c0_14 = arith.constant 0 : index
    %c0_15 = arith.constant 0 : index
    %18 = vector.load %arg10[%c0_14, %c0_15] : memref<1x32xf32, #tpu.memory_space<vmem>>, vector<1x32xf32>
    %19 = arith.truncf %16 : vector<16x96xf32> to vector<16x96xbf16>
    %cst_16 = arith.constant dense<0.000000e+00> : vector<16x32xf32>
    %20 = tpu.matmul %19, %17, %cst_16 {dimension_numbers = #tpu.dot_dimension_numbers<[1], [0], [0], [1], [0, 0, 1, 1], [], []>} : vector<16x96xbf16>, vector<96x32xbf16>, vector<16x32xf32> -> vector<16x32xf32>
    %21 = vector.broadcast %18 : vector<1x32xf32> to vector<16x32xf32>
    %22 = arith.addf %20, %21 : vector<16x32xf32>
    %c0_17 = arith.constant 0 : index
    %c0_18 = arith.constant 0 : index
    %23 = vector.load %arg2[%c0_17, %c0_18] : memref<16x32xf32, #tpu.memory_space<vmem>>, vector<16x32xf32>
    %24 = arith.addf %22, %23 : vector<16x32xf32>
    %c0_19 = arith.constant 0 : index
    %c0_20 = arith.constant 0 : index
    %25 = vector.load %arg1[%c0_19, %c0_20] : memref<16x32xi32, #tpu.memory_space<vmem>>, vector<16x32xi32>
    %c0_i32 = arith.constant 0 : i32
    %26 = vector.broadcast %c0_i32 : i32 to vector<16x32xi32>
    %27 = arith.cmpi ne, %25, %26 : vector<16x32xi32>
    %c0_21 = arith.constant 0 : index
    %c0_22 = arith.constant 0 : index
    %28 = vector.load %arg3[%c0_21, %c0_22] : memref<32x32xf32, #tpu.memory_space<vmem>>, vector<32x32xf32>
    %c0_23 = arith.constant 0 : index
    %c0_24 = arith.constant 0 : index
    %29 = vector.load %arg4[%c0_23, %c0_24] : memref<32x32xf32, #tpu.memory_space<vmem>>, vector<32x32xf32>
    %c0_25 = arith.constant 0 : index
    %c0_26 = arith.constant 0 : index
    %c0_27 = arith.constant 0 : index
    %30 = vector.load %arg11[%c0_25, %c0_26, %c0_27] : memref<2x1x32xf32, #tpu.memory_space<vmem>>, vector<1x1x32xf32>
    %31 = vector.shape_cast %30 : vector<1x1x32xf32> to vector<1x32xf32>
    %c0_28 = arith.constant 0 : index
    %c0_29 = arith.constant 0 : index
    %c0_30 = arith.constant 0 : index
    %32 = vector.load %arg12[%c0_28, %c0_29, %c0_30] : memref<2x1x32xf32, #tpu.memory_space<vmem>>, vector<1x1x32xf32>
    %33 = vector.shape_cast %32 : vector<1x1x32xf32> to vector<1x32xf32>
    %cst_31 = arith.constant dense<0.000000e+00> : vector<16xf32>
    %34 = vector.multi_reduction <add>, %24, %cst_31 [1] : vector<16x32xf32> to vector<16xf32>
    %35 = vector.shape_cast %34 : vector<16xf32> to vector<16x1xf32>
    %cst_32 = arith.constant 3.200000e+01 : f32
    %36 = vector.broadcast %cst_32 : f32 to vector<16x1xf32>
    %37 = arith.divf %35, %36 : vector<16x1xf32>
    %38 = vector.broadcast %37 : vector<16x1xf32> to vector<16x32xf32>
    %39 = arith.subf %24, %38 : vector<16x32xf32>
    %40 = arith.mulf %39, %39 : vector<16x32xf32>
    %cst_33 = arith.constant dense<0.000000e+00> : vector<16xf32>
    %41 = vector.multi_reduction <add>, %40, %cst_33 [1] : vector<16x32xf32> to vector<16xf32>
    %42 = vector.shape_cast %41 : vector<16xf32> to vector<16x1xf32>
    %cst_34 = arith.constant 3.200000e+01 : f32
    %43 = vector.broadcast %cst_34 : f32 to vector<16x1xf32>
    %44 = arith.divf %42, %43 : vector<16x1xf32>
    %45 = vector.broadcast %37 : vector<16x1xf32> to vector<16x32xf32>
    %46 = arith.subf %24, %45 : vector<16x32xf32>
    %cst_35 = arith.constant 9.99999974E-6 : f32
    %47 = vector.broadcast %cst_35 : f32 to vector<16x1xf32>
    %48 = arith.addf %44, %47 : vector<16x1xf32>
    %49 = math.rsqrt %48 : vector<16x1xf32>
    %50 = vector.broadcast %49 : vector<16x1xf32> to vector<16x32xf32>
    %51 = arith.mulf %46, %50 : vector<16x32xf32>
    %52 = vector.broadcast %31 : vector<1x32xf32> to vector<16x32xf32>
    %53 = arith.mulf %51, %52 : vector<16x32xf32>
    %54 = vector.broadcast %33 : vector<1x32xf32> to vector<16x32xf32>
    %55 = arith.addf %53, %54 : vector<16x32xf32>
    %c0_36 = arith.constant 0 : index
    %c0_37 = arith.constant 0 : index
    %c0_38 = arith.constant 0 : index
    %56 = vector.load %arg13[%c0_36, %c0_37, %c0_38] : memref<2x32x32xbf16, #tpu.memory_space<vmem>>, vector<1x32x32xbf16>
    %57 = vector.shape_cast %56 : vector<1x32x32xbf16> to vector<32x32xbf16>
    %58 = arith.truncf %55 : vector<16x32xf32> to vector<16x32xbf16>
    %cst_39 = arith.constant dense<0.000000e+00> : vector<16x32xf32>
    %59 = tpu.matmul %58, %57, %cst_39 {dimension_numbers = #tpu.dot_dimension_numbers<[1], [0], [0], [1], [0, 0, 1, 1], [], []>} : vector<16x32xbf16>, vector<32x32xbf16>, vector<16x32xf32> -> vector<16x32xf32>
    %60 = vector.shape_cast %59 : vector<16x32xf32> to vector<2x8x32xf32>
    %61 = arith.truncf %60 : vector<2x8x32xf32> to vector<2x8x32xbf16>
    %c0_40 = arith.constant 0 : index
    %c0_41 = arith.constant 0 : index
    %c0_42 = arith.constant 0 : index
    %62 = vector.load %arg14[%c0_40, %c0_41, %c0_42] : memref<2x32x32xbf16, #tpu.memory_space<vmem>>, vector<1x32x32xbf16>
    %63 = vector.shape_cast %62 : vector<1x32x32xbf16> to vector<32x32xbf16>
    %64 = arith.truncf %55 : vector<16x32xf32> to vector<16x32xbf16>
    %cst_43 = arith.constant dense<0.000000e+00> : vector<16x32xf32>
    %65 = tpu.matmul %64, %63, %cst_43 {dimension_numbers = #tpu.dot_dimension_numbers<[1], [0], [0], [1], [0, 0, 1, 1], [], []>} : vector<16x32xbf16>, vector<32x32xbf16>, vector<16x32xf32> -> vector<16x32xf32>
    %66 = vector.shape_cast %65 : vector<16x32xf32> to vector<2x8x32xf32>
    %c0_44 = arith.constant 0 : index
    %c0_45 = arith.constant 0 : index
    %c0_46 = arith.constant 0 : index
    %67 = vector.load %arg15[%c0_44, %c0_45, %c0_46] : memref<2x32x32xbf16, #tpu.memory_space<vmem>>, vector<1x32x32xbf16>
    %68 = vector.shape_cast %67 : vector<1x32x32xbf16> to vector<32x32xbf16>
    %69 = arith.truncf %55 : vector<16x32xf32> to vector<16x32xbf16>
    %cst_47 = arith.constant dense<0.000000e+00> : vector<16x32xf32>
    %70 = tpu.matmul %69, %68, %cst_47 {dimension_numbers = #tpu.dot_dimension_numbers<[1], [0], [0], [1], [0, 0, 1, 1], [], []>} : vector<16x32xbf16>, vector<32x32xbf16>, vector<16x32xf32> -> vector<16x32xf32>
    %71 = vector.shape_cast %70 : vector<16x32xf32> to vector<2x8x32xf32>
    %72 = tpu.concatenate %66, %66, %66, %66 in 1 : vector<2x8x32xf32>, vector<2x8x32xf32>, vector<2x8x32xf32>, vector<2x8x32xf32> -> vector<2x32x32xf32>
    %73 = vector.shape_cast %28 : vector<32x32xf32> to vector<1x32x32xf32>
    %74 = vector.broadcast %73 : vector<1x32x32xf32> to vector<2x32x32xf32>
    %75 = arith.mulf %72, %74 : vector<2x32x32xf32>
    %76 = arith.truncf %75 : vector<2x32x32xf32> to vector<2x32x32xbf16>
    %77 = tpu.concatenate %71, %71, %71, %71 in 1 : vector<2x8x32xf32>, vector<2x8x32xf32>, vector<2x8x32xf32>, vector<2x8x32xf32> -> vector<2x32x32xf32>
    %78 = vector.shape_cast %28 : vector<32x32xf32> to vector<1x32x32xf32>
    %79 = vector.broadcast %78 : vector<1x32x32xf32> to vector<2x32x32xf32>
    %80 = arith.mulf %77, %79 : vector<2x32x32xf32>
    %81 = arith.truncf %80 : vector<2x32x32xf32> to vector<2x32x32xbf16>
    "tpu.trace_start"() <{level = 10 : i32, message = "bqd,bjd->bqj"}> : () -> ()
    %cst_48 = arith.constant dense<0.000000e+00> : vector<2x8x32xf32>
    %82 = tpu.matmul %61, %76, %cst_48 {dimension_numbers = #tpu.dot_dimension_numbers<[2], [2], [1], [1], [0, 0, 0, 1, 1, 1], [0], [0]>} : vector<2x8x32xbf16>, vector<2x32x32xbf16>, vector<2x8x32xf32> -> vector<2x8x32xf32>
    "tpu.trace_stop"() : () -> ()
    %83 = vector.shape_cast %82 : vector<2x8x32xf32> to vector<16x32xf32>
    %cst_49 = arith.constant -1.000000e+09 : f32
    %84 = vector.broadcast %cst_49 : f32 to vector<16x32xf32>
    %85 = arith.select %27, %83, %84 : vector<16x32xi1>, vector<16x32xf32>
    %cst_50 = arith.constant dense<0xFF800000> : vector<16xf32>
    %86 = vector.multi_reduction <maximumf>, %85, %cst_50 [1] : vector<16x32xf32> to vector<16xf32>
    %87 = vector.shape_cast %86 : vector<16xf32> to vector<16x1xf32>
    %88 = vector.broadcast %87 : vector<16x1xf32> to vector<16x32xf32>
    %89 = arith.subf %85, %88 : vector<16x32xf32>
    %90 = math.exp %89 : vector<16x32xf32>
    %cst_51 = arith.constant dense<0.000000e+00> : vector<16x32xf32>
    %91 = tpu.matmul %90, %29, %cst_51 {dimension_numbers = #tpu.dot_dimension_numbers<[1], [0], [0], [1], [0, 0, 1, 1], [], []>} : vector<16x32xf32>, vector<32x32xf32>, vector<16x32xf32> -> vector<16x32xf32>
    %92 = tpu.reciprocal %91 {approx = true} : vector<16x32xf32> -> vector<16x32xf32>
    %93 = arith.mulf %90, %92 : vector<16x32xf32>
    %94 = vector.shape_cast %93 : vector<16x32xf32> to vector<2x8x32xf32>
    %95 = arith.truncf %94 : vector<2x8x32xf32> to vector<2x8x32xbf16>
    "tpu.trace_start"() <{level = 10 : i32, message = "bqj,bjd->bqd"}> : () -> ()
    %cst_52 = arith.constant dense<0.000000e+00> : vector<2x8x32xf32>
    %96 = tpu.matmul %95, %81, %cst_52 {dimension_numbers = #tpu.dot_dimension_numbers<[2], [1], [1], [2], [0, 0, 0, 1, 1, 2], [0], [0]>} : vector<2x8x32xbf16>, vector<2x32x32xbf16>, vector<2x8x32xf32> -> vector<2x8x32xf32>
    "tpu.trace_stop"() : () -> ()
    %97 = vector.shape_cast %96 : vector<2x8x32xf32> to vector<16x32xf32>
    %c0_53 = arith.constant 0 : index
    %c0_54 = arith.constant 0 : index
    %c0_55 = arith.constant 0 : index
    %98 = vector.load %arg16[%c0_53, %c0_54, %c0_55] : memref<2x32x32xbf16, #tpu.memory_space<vmem>>, vector<1x32x32xbf16>
    %99 = vector.shape_cast %98 : vector<1x32x32xbf16> to vector<32x32xbf16>
    %c0_56 = arith.constant 0 : index
    %c0_57 = arith.constant 0 : index
    %c0_58 = arith.constant 0 : index
    %100 = vector.load %arg17[%c0_56, %c0_57, %c0_58] : memref<2x1x32xf32, #tpu.memory_space<vmem>>, vector<1x1x32xf32>
    %101 = vector.shape_cast %100 : vector<1x1x32xf32> to vector<1x32xf32>
    %102 = arith.truncf %97 : vector<16x32xf32> to vector<16x32xbf16>
    %cst_59 = arith.constant dense<0.000000e+00> : vector<16x32xf32>
    %103 = tpu.matmul %102, %99, %cst_59 {dimension_numbers = #tpu.dot_dimension_numbers<[1], [0], [0], [1], [0, 0, 1, 1], [], []>} : vector<16x32xbf16>, vector<32x32xbf16>, vector<16x32xf32> -> vector<16x32xf32>
    %104 = vector.broadcast %101 : vector<1x32xf32> to vector<16x32xf32>
    %105 = arith.addf %103, %104 : vector<16x32xf32>
    %106 = arith.addf %24, %105 : vector<16x32xf32>
    %c0_60 = arith.constant 0 : index
    %c0_61 = arith.constant 0 : index
    %c0_62 = arith.constant 0 : index
    %107 = vector.load %arg18[%c0_60, %c0_61, %c0_62] : memref<2x1x32xf32, #tpu.memory_space<vmem>>, vector<1x1x32xf32>
    %108 = vector.shape_cast %107 : vector<1x1x32xf32> to vector<1x32xf32>
    %c0_63 = arith.constant 0 : index
    %c0_64 = arith.constant 0 : index
    %c0_65 = arith.constant 0 : index
    %109 = vector.load %arg19[%c0_63, %c0_64, %c0_65] : memref<2x1x32xf32, #tpu.memory_space<vmem>>, vector<1x1x32xf32>
    %110 = vector.shape_cast %109 : vector<1x1x32xf32> to vector<1x32xf32>
    %cst_66 = arith.constant dense<0.000000e+00> : vector<16xf32>
    %111 = vector.multi_reduction <add>, %106, %cst_66 [1] : vector<16x32xf32> to vector<16xf32>
    %112 = vector.shape_cast %111 : vector<16xf32> to vector<16x1xf32>
    %cst_67 = arith.constant 3.200000e+01 : f32
    %113 = vector.broadcast %cst_67 : f32 to vector<16x1xf32>
    %114 = arith.divf %112, %113 : vector<16x1xf32>
    %115 = vector.broadcast %114 : vector<16x1xf32> to vector<16x32xf32>
    %116 = arith.subf %106, %115 : vector<16x32xf32>
    %117 = arith.mulf %116, %116 : vector<16x32xf32>
    %cst_68 = arith.constant dense<0.000000e+00> : vector<16xf32>
    %118 = vector.multi_reduction <add>, %117, %cst_68 [1] : vector<16x32xf32> to vector<16xf32>
    %119 = vector.shape_cast %118 : vector<16xf32> to vector<16x1xf32>
    %cst_69 = arith.constant 3.200000e+01 : f32
    %120 = vector.broadcast %cst_69 : f32 to vector<16x1xf32>
    %121 = arith.divf %119, %120 : vector<16x1xf32>
    %122 = vector.broadcast %114 : vector<16x1xf32> to vector<16x32xf32>
    %123 = arith.subf %106, %122 : vector<16x32xf32>
    %cst_70 = arith.constant 9.99999974E-6 : f32
    %124 = vector.broadcast %cst_70 : f32 to vector<16x1xf32>
    %125 = arith.addf %121, %124 : vector<16x1xf32>
    %126 = math.rsqrt %125 : vector<16x1xf32>
    %127 = vector.broadcast %126 : vector<16x1xf32> to vector<16x32xf32>
    %128 = arith.mulf %123, %127 : vector<16x32xf32>
    %129 = vector.broadcast %108 : vector<1x32xf32> to vector<16x32xf32>
    %130 = arith.mulf %128, %129 : vector<16x32xf32>
    %131 = vector.broadcast %110 : vector<1x32xf32> to vector<16x32xf32>
    %132 = arith.addf %130, %131 : vector<16x32xf32>
    %c0_71 = arith.constant 0 : index
    %c0_72 = arith.constant 0 : index
    %c0_73 = arith.constant 0 : index
    %133 = vector.load %arg20[%c0_71, %c0_72, %c0_73] : memref<2x32x128xbf16, #tpu.memory_space<vmem>>, vector<1x32x128xbf16>
    %134 = vector.shape_cast %133 : vector<1x32x128xbf16> to vector<32x128xbf16>
    %c0_74 = arith.constant 0 : index
    %c0_75 = arith.constant 0 : index
    %c0_76 = arith.constant 0 : index
    %135 = vector.load %arg21[%c0_74, %c0_75, %c0_76] : memref<2x1x128xf32, #tpu.memory_space<vmem>>, vector<1x1x128xf32>
    %136 = vector.shape_cast %135 : vector<1x1x128xf32> to vector<1x128xf32>
    %137 = arith.truncf %132 : vector<16x32xf32> to vector<16x32xbf16>
    %cst_77 = arith.constant dense<0.000000e+00> : vector<16x128xf32>
    %138 = tpu.matmul %137, %134, %cst_77 {dimension_numbers = #tpu.dot_dimension_numbers<[1], [0], [0], [1], [0, 0, 1, 1], [], []>} : vector<16x32xbf16>, vector<32x128xbf16>, vector<16x128xf32> -> vector<16x128xf32>
    %139 = vector.broadcast %136 : vector<1x128xf32> to vector<16x128xf32>
    %140 = arith.addf %138, %139 : vector<16x128xf32>
    %141 = arith.mulf %140, %140 : vector<16x128xf32>
    %142 = arith.mulf %140, %141 : vector<16x128xf32>
    %cst_78 = arith.constant 4.471500e-02 : f32
    %143 = vector.broadcast %cst_78 : f32 to vector<16x128xf32>
    %144 = arith.mulf %143, %142 : vector<16x128xf32>
    %145 = arith.addf %140, %144 : vector<16x128xf32>
    %cst_79 = arith.constant 0.797884583 : f32
    %146 = vector.broadcast %cst_79 : f32 to vector<16x128xf32>
    %147 = arith.mulf %146, %145 : vector<16x128xf32>
    %148 = math.tanh %147 : vector<16x128xf32>
    %cst_80 = arith.constant 1.000000e+00 : f32
    %149 = vector.broadcast %cst_80 : f32 to vector<16x128xf32>
    %150 = arith.addf %149, %148 : vector<16x128xf32>
    %cst_81 = arith.constant 5.000000e-01 : f32
    %151 = vector.broadcast %cst_81 : f32 to vector<16x128xf32>
    %152 = arith.mulf %151, %150 : vector<16x128xf32>
    %153 = arith.mulf %140, %152 : vector<16x128xf32>
    %c0_82 = arith.constant 0 : index
    %c0_83 = arith.constant 0 : index
    %c0_84 = arith.constant 0 : index
    %154 = vector.load %arg22[%c0_82, %c0_83, %c0_84] : memref<2x128x32xbf16, #tpu.memory_space<vmem>>, vector<1x128x32xbf16>
    %155 = vector.shape_cast %154 : vector<1x128x32xbf16> to vector<128x32xbf16>
    %c0_85 = arith.constant 0 : index
    %c0_86 = arith.constant 0 : index
    %c0_87 = arith.constant 0 : index
    %156 = vector.load %arg23[%c0_85, %c0_86, %c0_87] : memref<2x1x32xf32, #tpu.memory_space<vmem>>, vector<1x1x32xf32>
    %157 = vector.shape_cast %156 : vector<1x1x32xf32> to vector<1x32xf32>
    %158 = arith.truncf %153 : vector<16x128xf32> to vector<16x128xbf16>
    %cst_88 = arith.constant dense<0.000000e+00> : vector<16x32xf32>
    %159 = tpu.matmul %158, %155, %cst_88 {dimension_numbers = #tpu.dot_dimension_numbers<[1], [0], [0], [1], [0, 0, 1, 1], [], []>} : vector<16x128xbf16>, vector<128x32xbf16>, vector<16x32xf32> -> vector<16x32xf32>
    %160 = vector.broadcast %157 : vector<1x32xf32> to vector<16x32xf32>
    %161 = arith.addf %159, %160 : vector<16x32xf32>
    %162 = arith.addf %106, %161 : vector<16x32xf32>
    %c1 = arith.constant 1 : index
    %c0_89 = arith.constant 0 : index
    %c0_90 = arith.constant 0 : index
    %163 = vector.load %arg11[%c1, %c0_89, %c0_90] : memref<2x1x32xf32, #tpu.memory_space<vmem>>, vector<1x1x32xf32>
    %164 = vector.shape_cast %163 : vector<1x1x32xf32> to vector<1x32xf32>
    %c1_91 = arith.constant 1 : index
    %c0_92 = arith.constant 0 : index
    %c0_93 = arith.constant 0 : index
    %165 = vector.load %arg12[%c1_91, %c0_92, %c0_93] : memref<2x1x32xf32, #tpu.memory_space<vmem>>, vector<1x1x32xf32>
    %166 = vector.shape_cast %165 : vector<1x1x32xf32> to vector<1x32xf32>
    %cst_94 = arith.constant dense<0.000000e+00> : vector<16xf32>
    %167 = vector.multi_reduction <add>, %162, %cst_94 [1] : vector<16x32xf32> to vector<16xf32>
    %168 = vector.shape_cast %167 : vector<16xf32> to vector<16x1xf32>
    %cst_95 = arith.constant 3.200000e+01 : f32
    %169 = vector.broadcast %cst_95 : f32 to vector<16x1xf32>
    %170 = arith.divf %168, %169 : vector<16x1xf32>
    %171 = vector.broadcast %170 : vector<16x1xf32> to vector<16x32xf32>
    %172 = arith.subf %162, %171 : vector<16x32xf32>
    %173 = arith.mulf %172, %172 : vector<16x32xf32>
    %cst_96 = arith.constant dense<0.000000e+00> : vector<16xf32>
    %174 = vector.multi_reduction <add>, %173, %cst_96 [1] : vector<16x32xf32> to vector<16xf32>
    %175 = vector.shape_cast %174 : vector<16xf32> to vector<16x1xf32>
    %cst_97 = arith.constant 3.200000e+01 : f32
    %176 = vector.broadcast %cst_97 : f32 to vector<16x1xf32>
    %177 = arith.divf %175, %176 : vector<16x1xf32>
    %178 = vector.broadcast %170 : vector<16x1xf32> to vector<16x32xf32>
    %179 = arith.subf %162, %178 : vector<16x32xf32>
    %cst_98 = arith.constant 9.99999974E-6 : f32
    %180 = vector.broadcast %cst_98 : f32 to vector<16x1xf32>
    %181 = arith.addf %177, %180 : vector<16x1xf32>
    %182 = math.rsqrt %181 : vector<16x1xf32>
    %183 = vector.broadcast %182 : vector<16x1xf32> to vector<16x32xf32>
    %184 = arith.mulf %179, %183 : vector<16x32xf32>
    %185 = vector.broadcast %164 : vector<1x32xf32> to vector<16x32xf32>
    %186 = arith.mulf %184, %185 : vector<16x32xf32>
    %187 = vector.broadcast %166 : vector<1x32xf32> to vector<16x32xf32>
    %188 = arith.addf %186, %187 : vector<16x32xf32>
    %c1_99 = arith.constant 1 : index
    %c0_100 = arith.constant 0 : index
    %c0_101 = arith.constant 0 : index
    %189 = vector.load %arg13[%c1_99, %c0_100, %c0_101] : memref<2x32x32xbf16, #tpu.memory_space<vmem>>, vector<1x32x32xbf16>
    %190 = vector.shape_cast %189 : vector<1x32x32xbf16> to vector<32x32xbf16>
    %191 = arith.truncf %188 : vector<16x32xf32> to vector<16x32xbf16>
    %cst_102 = arith.constant dense<0.000000e+00> : vector<16x32xf32>
    %192 = tpu.matmul %191, %190, %cst_102 {dimension_numbers = #tpu.dot_dimension_numbers<[1], [0], [0], [1], [0, 0, 1, 1], [], []>} : vector<16x32xbf16>, vector<32x32xbf16>, vector<16x32xf32> -> vector<16x32xf32>
    %193 = vector.shape_cast %192 : vector<16x32xf32> to vector<2x8x32xf32>
    %194 = arith.truncf %193 : vector<2x8x32xf32> to vector<2x8x32xbf16>
    %c1_103 = arith.constant 1 : index
    %c0_104 = arith.constant 0 : index
    %c0_105 = arith.constant 0 : index
    %195 = vector.load %arg14[%c1_103, %c0_104, %c0_105] : memref<2x32x32xbf16, #tpu.memory_space<vmem>>, vector<1x32x32xbf16>
    %196 = vector.shape_cast %195 : vector<1x32x32xbf16> to vector<32x32xbf16>
    %197 = arith.truncf %188 : vector<16x32xf32> to vector<16x32xbf16>
    %cst_106 = arith.constant dense<0.000000e+00> : vector<16x32xf32>
    %198 = tpu.matmul %197, %196, %cst_106 {dimension_numbers = #tpu.dot_dimension_numbers<[1], [0], [0], [1], [0, 0, 1, 1], [], []>} : vector<16x32xbf16>, vector<32x32xbf16>, vector<16x32xf32> -> vector<16x32xf32>
    %199 = vector.shape_cast %198 : vector<16x32xf32> to vector<2x8x32xf32>
    %c1_107 = arith.constant 1 : index
    %c0_108 = arith.constant 0 : index
    %c0_109 = arith.constant 0 : index
    %200 = vector.load %arg15[%c1_107, %c0_108, %c0_109] : memref<2x32x32xbf16, #tpu.memory_space<vmem>>, vector<1x32x32xbf16>
    %201 = vector.shape_cast %200 : vector<1x32x32xbf16> to vector<32x32xbf16>
    %202 = arith.truncf %188 : vector<16x32xf32> to vector<16x32xbf16>
    %cst_110 = arith.constant dense<0.000000e+00> : vector<16x32xf32>
    %203 = tpu.matmul %202, %201, %cst_110 {dimension_numbers = #tpu.dot_dimension_numbers<[1], [0], [0], [1], [0, 0, 1, 1], [], []>} : vector<16x32xbf16>, vector<32x32xbf16>, vector<16x32xf32> -> vector<16x32xf32>
    %204 = vector.shape_cast %203 : vector<16x32xf32> to vector<2x8x32xf32>
    %205 = tpu.concatenate %199, %199, %199, %199 in 1 : vector<2x8x32xf32>, vector<2x8x32xf32>, vector<2x8x32xf32>, vector<2x8x32xf32> -> vector<2x32x32xf32>
    %206 = vector.shape_cast %28 : vector<32x32xf32> to vector<1x32x32xf32>
    %207 = vector.broadcast %206 : vector<1x32x32xf32> to vector<2x32x32xf32>
    %208 = arith.mulf %205, %207 : vector<2x32x32xf32>
    %209 = arith.truncf %208 : vector<2x32x32xf32> to vector<2x32x32xbf16>
    %210 = tpu.concatenate %204, %204, %204, %204 in 1 : vector<2x8x32xf32>, vector<2x8x32xf32>, vector<2x8x32xf32>, vector<2x8x32xf32> -> vector<2x32x32xf32>
    %211 = vector.shape_cast %28 : vector<32x32xf32> to vector<1x32x32xf32>
    %212 = vector.broadcast %211 : vector<1x32x32xf32> to vector<2x32x32xf32>
    %213 = arith.mulf %210, %212 : vector<2x32x32xf32>
    %214 = arith.truncf %213 : vector<2x32x32xf32> to vector<2x32x32xbf16>
    "tpu.trace_start"() <{level = 10 : i32, message = "bqd,bjd->bqj"}> : () -> ()
    %cst_111 = arith.constant dense<0.000000e+00> : vector<2x8x32xf32>
    %215 = tpu.matmul %194, %209, %cst_111 {dimension_numbers = #tpu.dot_dimension_numbers<[2], [2], [1], [1], [0, 0, 0, 1, 1, 1], [0], [0]>} : vector<2x8x32xbf16>, vector<2x32x32xbf16>, vector<2x8x32xf32> -> vector<2x8x32xf32>
    "tpu.trace_stop"() : () -> ()
    %216 = vector.shape_cast %215 : vector<2x8x32xf32> to vector<16x32xf32>
    %cst_112 = arith.constant -1.000000e+09 : f32
    %217 = vector.broadcast %cst_112 : f32 to vector<16x32xf32>
    %218 = arith.select %27, %216, %217 : vector<16x32xi1>, vector<16x32xf32>
    %cst_113 = arith.constant dense<0xFF800000> : vector<16xf32>
    %219 = vector.multi_reduction <maximumf>, %218, %cst_113 [1] : vector<16x32xf32> to vector<16xf32>
    %220 = vector.shape_cast %219 : vector<16xf32> to vector<16x1xf32>
    %221 = vector.broadcast %220 : vector<16x1xf32> to vector<16x32xf32>
    %222 = arith.subf %218, %221 : vector<16x32xf32>
    %223 = math.exp %222 : vector<16x32xf32>
    %cst_114 = arith.constant dense<0.000000e+00> : vector<16x32xf32>
    %224 = tpu.matmul %223, %29, %cst_114 {dimension_numbers = #tpu.dot_dimension_numbers<[1], [0], [0], [1], [0, 0, 1, 1], [], []>} : vector<16x32xf32>, vector<32x32xf32>, vector<16x32xf32> -> vector<16x32xf32>
    %225 = tpu.reciprocal %224 {approx = true} : vector<16x32xf32> -> vector<16x32xf32>
    %226 = arith.mulf %223, %225 : vector<16x32xf32>
    %227 = vector.shape_cast %226 : vector<16x32xf32> to vector<2x8x32xf32>
    %228 = arith.truncf %227 : vector<2x8x32xf32> to vector<2x8x32xbf16>
    "tpu.trace_start"() <{level = 10 : i32, message = "bqj,bjd->bqd"}> : () -> ()
    %cst_115 = arith.constant dense<0.000000e+00> : vector<2x8x32xf32>
    %229 = tpu.matmul %228, %214, %cst_115 {dimension_numbers = #tpu.dot_dimension_numbers<[2], [1], [1], [2], [0, 0, 0, 1, 1, 2], [0], [0]>} : vector<2x8x32xbf16>, vector<2x32x32xbf16>, vector<2x8x32xf32> -> vector<2x8x32xf32>
    "tpu.trace_stop"() : () -> ()
    %230 = vector.shape_cast %229 : vector<2x8x32xf32> to vector<16x32xf32>
    %c1_116 = arith.constant 1 : index
    %c0_117 = arith.constant 0 : index
    %c0_118 = arith.constant 0 : index
    %231 = vector.load %arg16[%c1_116, %c0_117, %c0_118] : memref<2x32x32xbf16, #tpu.memory_space<vmem>>, vector<1x32x32xbf16>
    %232 = vector.shape_cast %231 : vector<1x32x32xbf16> to vector<32x32xbf16>
    %c1_119 = arith.constant 1 : index
    %c0_120 = arith.constant 0 : index
    %c0_121 = arith.constant 0 : index
    %233 = vector.load %arg17[%c1_119, %c0_120, %c0_121] : memref<2x1x32xf32, #tpu.memory_space<vmem>>, vector<1x1x32xf32>
    %234 = vector.shape_cast %233 : vector<1x1x32xf32> to vector<1x32xf32>
    %235 = arith.truncf %230 : vector<16x32xf32> to vector<16x32xbf16>
    %cst_122 = arith.constant dense<0.000000e+00> : vector<16x32xf32>
    %236 = tpu.matmul %235, %232, %cst_122 {dimension_numbers = #tpu.dot_dimension_numbers<[1], [0], [0], [1], [0, 0, 1, 1], [], []>} : vector<16x32xbf16>, vector<32x32xbf16>, vector<16x32xf32> -> vector<16x32xf32>
    %237 = vector.broadcast %234 : vector<1x32xf32> to vector<16x32xf32>
    %238 = arith.addf %236, %237 : vector<16x32xf32>
    %239 = arith.addf %162, %238 : vector<16x32xf32>
    %c1_123 = arith.constant 1 : index
    %c0_124 = arith.constant 0 : index
    %c0_125 = arith.constant 0 : index
    %240 = vector.load %arg18[%c1_123, %c0_124, %c0_125] : memref<2x1x32xf32, #tpu.memory_space<vmem>>, vector<1x1x32xf32>
    %241 = vector.shape_cast %240 : vector<1x1x32xf32> to vector<1x32xf32>
    %c1_126 = arith.constant 1 : index
    %c0_127 = arith.constant 0 : index
    %c0_128 = arith.constant 0 : index
    %242 = vector.load %arg19[%c1_126, %c0_127, %c0_128] : memref<2x1x32xf32, #tpu.memory_space<vmem>>, vector<1x1x32xf32>
    %243 = vector.shape_cast %242 : vector<1x1x32xf32> to vector<1x32xf32>
    %cst_129 = arith.constant dense<0.000000e+00> : vector<16xf32>
    %244 = vector.multi_reduction <add>, %239, %cst_129 [1] : vector<16x32xf32> to vector<16xf32>
    %245 = vector.shape_cast %244 : vector<16xf32> to vector<16x1xf32>
    %cst_130 = arith.constant 3.200000e+01 : f32
    %246 = vector.broadcast %cst_130 : f32 to vector<16x1xf32>
    %247 = arith.divf %245, %246 : vector<16x1xf32>
    %248 = vector.broadcast %247 : vector<16x1xf32> to vector<16x32xf32>
    %249 = arith.subf %239, %248 : vector<16x32xf32>
    %250 = arith.mulf %249, %249 : vector<16x32xf32>
    %cst_131 = arith.constant dense<0.000000e+00> : vector<16xf32>
    %251 = vector.multi_reduction <add>, %250, %cst_131 [1] : vector<16x32xf32> to vector<16xf32>
    %252 = vector.shape_cast %251 : vector<16xf32> to vector<16x1xf32>
    %cst_132 = arith.constant 3.200000e+01 : f32
    %253 = vector.broadcast %cst_132 : f32 to vector<16x1xf32>
    %254 = arith.divf %252, %253 : vector<16x1xf32>
    %255 = vector.broadcast %247 : vector<16x1xf32> to vector<16x32xf32>
    %256 = arith.subf %239, %255 : vector<16x32xf32>
    %cst_133 = arith.constant 9.99999974E-6 : f32
    %257 = vector.broadcast %cst_133 : f32 to vector<16x1xf32>
    %258 = arith.addf %254, %257 : vector<16x1xf32>
    %259 = math.rsqrt %258 : vector<16x1xf32>
    %260 = vector.broadcast %259 : vector<16x1xf32> to vector<16x32xf32>
    %261 = arith.mulf %256, %260 : vector<16x32xf32>
    %262 = vector.broadcast %241 : vector<1x32xf32> to vector<16x32xf32>
    %263 = arith.mulf %261, %262 : vector<16x32xf32>
    %264 = vector.broadcast %243 : vector<1x32xf32> to vector<16x32xf32>
    %265 = arith.addf %263, %264 : vector<16x32xf32>
    %c1_134 = arith.constant 1 : index
    %c0_135 = arith.constant 0 : index
    %c0_136 = arith.constant 0 : index
    %266 = vector.load %arg20[%c1_134, %c0_135, %c0_136] : memref<2x32x128xbf16, #tpu.memory_space<vmem>>, vector<1x32x128xbf16>
    %267 = vector.shape_cast %266 : vector<1x32x128xbf16> to vector<32x128xbf16>
    %c1_137 = arith.constant 1 : index
    %c0_138 = arith.constant 0 : index
    %c0_139 = arith.constant 0 : index
    %268 = vector.load %arg21[%c1_137, %c0_138, %c0_139] : memref<2x1x128xf32, #tpu.memory_space<vmem>>, vector<1x1x128xf32>
    %269 = vector.shape_cast %268 : vector<1x1x128xf32> to vector<1x128xf32>
    %270 = arith.truncf %265 : vector<16x32xf32> to vector<16x32xbf16>
    %cst_140 = arith.constant dense<0.000000e+00> : vector<16x128xf32>
    %271 = tpu.matmul %270, %267, %cst_140 {dimension_numbers = #tpu.dot_dimension_numbers<[1], [0], [0], [1], [0, 0, 1, 1], [], []>} : vector<16x32xbf16>, vector<32x128xbf16>, vector<16x128xf32> -> vector<16x128xf32>
    %272 = vector.broadcast %269 : vector<1x128xf32> to vector<16x128xf32>
    %273 = arith.addf %271, %272 : vector<16x128xf32>
    %274 = arith.mulf %273, %273 : vector<16x128xf32>
    %275 = arith.mulf %273, %274 : vector<16x128xf32>
    %cst_141 = arith.constant 4.471500e-02 : f32
    %276 = vector.broadcast %cst_141 : f32 to vector<16x128xf32>
    %277 = arith.mulf %276, %275 : vector<16x128xf32>
    %278 = arith.addf %273, %277 : vector<16x128xf32>
    %cst_142 = arith.constant 0.797884583 : f32
    %279 = vector.broadcast %cst_142 : f32 to vector<16x128xf32>
    %280 = arith.mulf %279, %278 : vector<16x128xf32>
    %281 = math.tanh %280 : vector<16x128xf32>
    %cst_143 = arith.constant 1.000000e+00 : f32
    %282 = vector.broadcast %cst_143 : f32 to vector<16x128xf32>
    %283 = arith.addf %282, %281 : vector<16x128xf32>
    %cst_144 = arith.constant 5.000000e-01 : f32
    %284 = vector.broadcast %cst_144 : f32 to vector<16x128xf32>
    %285 = arith.mulf %284, %283 : vector<16x128xf32>
    %286 = arith.mulf %273, %285 : vector<16x128xf32>
    %c1_145 = arith.constant 1 : index
    %c0_146 = arith.constant 0 : index
    %c0_147 = arith.constant 0 : index
    %287 = vector.load %arg22[%c1_145, %c0_146, %c0_147] : memref<2x128x32xbf16, #tpu.memory_space<vmem>>, vector<1x128x32xbf16>
    %288 = vector.shape_cast %287 : vector<1x128x32xbf16> to vector<128x32xbf16>
    %c1_148 = arith.constant 1 : index
    %c0_149 = arith.constant 0 : index
    %c0_150 = arith.constant 0 : index
    %289 = vector.load %arg23[%c1_148, %c0_149, %c0_150] : memref<2x1x32xf32, #tpu.memory_space<vmem>>, vector<1x1x32xf32>
    %290 = vector.shape_cast %289 : vector<1x1x32xf32> to vector<1x32xf32>
    %291 = arith.truncf %286 : vector<16x128xf32> to vector<16x128xbf16>
    %cst_151 = arith.constant dense<0.000000e+00> : vector<16x32xf32>
    %292 = tpu.matmul %291, %288, %cst_151 {dimension_numbers = #tpu.dot_dimension_numbers<[1], [0], [0], [1], [0, 0, 1, 1], [], []>} : vector<16x128xbf16>, vector<128x32xbf16>, vector<16x32xf32> -> vector<16x32xf32>
    %293 = vector.broadcast %290 : vector<1x32xf32> to vector<16x32xf32>
    %294 = arith.addf %292, %293 : vector<16x32xf32>
    %295 = arith.addf %239, %294 : vector<16x32xf32>
    %c0_152 = arith.constant 0 : index
    %c0_153 = arith.constant 0 : index
    %296 = vector.load %arg24[%c0_152, %c0_153] : memref<1x32xf32, #tpu.memory_space<vmem>>, vector<1x32xf32>
    %c0_154 = arith.constant 0 : index
    %c0_155 = arith.constant 0 : index
    %297 = vector.load %arg25[%c0_154, %c0_155] : memref<1x32xf32, #tpu.memory_space<vmem>>, vector<1x32xf32>
    %cst_156 = arith.constant dense<0.000000e+00> : vector<16xf32>
    %298 = vector.multi_reduction <add>, %295, %cst_156 [1] : vector<16x32xf32> to vector<16xf32>
    %299 = vector.shape_cast %298 : vector<16xf32> to vector<16x1xf32>
    %cst_157 = arith.constant 3.200000e+01 : f32
    %300 = vector.broadcast %cst_157 : f32 to vector<16x1xf32>
    %301 = arith.divf %299, %300 : vector<16x1xf32>
    %302 = vector.broadcast %301 : vector<16x1xf32> to vector<16x32xf32>
    %303 = arith.subf %295, %302 : vector<16x32xf32>
    %304 = arith.mulf %303, %303 : vector<16x32xf32>
    %cst_158 = arith.constant dense<0.000000e+00> : vector<16xf32>
    %305 = vector.multi_reduction <add>, %304, %cst_158 [1] : vector<16x32xf32> to vector<16xf32>
    %306 = vector.shape_cast %305 : vector<16xf32> to vector<16x1xf32>
    %cst_159 = arith.constant 3.200000e+01 : f32
    %307 = vector.broadcast %cst_159 : f32 to vector<16x1xf32>
    %308 = arith.divf %306, %307 : vector<16x1xf32>
    %309 = vector.broadcast %301 : vector<16x1xf32> to vector<16x32xf32>
    %310 = arith.subf %295, %309 : vector<16x32xf32>
    %cst_160 = arith.constant 9.99999974E-6 : f32
    %311 = vector.broadcast %cst_160 : f32 to vector<16x1xf32>
    %312 = arith.addf %308, %311 : vector<16x1xf32>
    %313 = math.rsqrt %312 : vector<16x1xf32>
    %314 = vector.broadcast %313 : vector<16x1xf32> to vector<16x32xf32>
    %315 = arith.mulf %310, %314 : vector<16x32xf32>
    %316 = vector.broadcast %296 : vector<1x32xf32> to vector<16x32xf32>
    %317 = arith.mulf %315, %316 : vector<16x32xf32>
    %318 = vector.broadcast %297 : vector<1x32xf32> to vector<16x32xf32>
    %319 = arith.addf %317, %318 : vector<16x32xf32>
    %c0_161 = arith.constant 0 : index
    %c0_162 = arith.constant 0 : index
    %320 = vector.load %arg26[%c0_161, %c0_162] : memref<16x32xf32, #tpu.memory_space<vmem>>, vector<16x32xf32>
    tpu.vector_store %arg26[%c0_161, %c0_162], %319 {strides = array<i32>} : memref<16x32xf32, #tpu.memory_space<vmem>>, vector<16x32xf32>,
    return
  }
}

</mosaic_0001>

<llo_original>
// kernel: tile.9
$region0: #{tile.9}
  %s0 = inlined_call_operand.vmem [shape: s32[2,1,8,4,8], index: 0, kind: input, shape index: {}]
  %s1 = inlined_call_operand.vmem [shape: s32[16,32], index: 1, kind: output, shape index: {}]
  $region1: #{tile.9} parent=0
    #allocation0 [shape = 'u8[65536]{0}', space=vmem, size = 0x10000, scoped, tag = 'scoped mem for input reshape']
    %s3 = sshllo.u32 0, 4
    %s4 = smul.addr 4, 15
    %s5 = scalar_lea.vmem %s0, %s4
    %v6 = vld [vmem:[%s5] sm:%s3]
    %s7 = scalar_lea.vmem [#allocation0], 120
    %8 = vst [vmem:[%s7] sm:%s3] %v6
    %s9 = smul.addr 4, 14
    %s10 = scalar_lea.vmem %s0, %s9
    %v11 = vld [vmem:[%s10] sm:%s3]
    %s12 = scalar_lea.vmem [#allocation0], 112
    %13 = vst [vmem:[%s12] sm:%s3] %v11
    %s14 = smul.addr 4, 13
    %s15 = scalar_lea.vmem %s0, %s14
    %v16 = vld [vmem:[%s15] sm:%s3]
    %s17 = scalar_lea.vmem [#allocation0], 104
    %18 = vst [vmem:[%s17] sm:%s3] %v16
    %s19 = smul.addr 4, 12
    %s20 = scalar_lea.vmem %s0, %s19
    %v21 = vld [vmem:[%s20] sm:%s3]
    %s22 = scalar_lea.vmem [#allocation0], 96
    %23 = vst [vmem:[%s22] sm:%s3] %v21
    %s24 = smul.addr 4, 11
    %s25 = scalar_lea.vmem %s0, %s24
    %v26 = vld [vmem:[%s25] sm:%s3]
    %s27 = scalar_lea.vmem [#allocation0], 88
    %28 = vst [vmem:[%s27] sm:%s3] %v26
    %s29 = smul.addr 4, 10
    %s30 = scalar_lea.vmem %s0, %s29
    %v31 = vld [vmem:[%s30] sm:%s3]
    %s32 = scalar_lea.vmem [#allocation0], 80
    %33 = vst [vmem:[%s32] sm:%s3] %v31
    %s34 = smul.addr 4, 9
    %s35 = scalar_lea.vmem %s0, %s34
    %v36 = vld [vmem:[%s35] sm:%s3]
    %s37 = scalar_lea.vmem [#allocation0], 72
    %38 = vst [vmem:[%s37] sm:%s3] %v36
    %s39 = smul.addr 4, 8
    %s40 = scalar_lea.vmem %s0, %s39
    %v41 = vld [vmem:[%s40] sm:%s3]
    %s42 = scalar_lea.vmem [#allocation0], 64
    %43 = vst [vmem:[%s42] sm:%s3] %v41
    %s44 = smul.addr 4, 7
    %s45 = scalar_lea.vmem %s0, %s44
    %v46 = vld [vmem:[%s45] sm:%s3]
    %s47 = scalar_lea.vmem [#allocation0], 56
    %48 = vst [vmem:[%s47] sm:%s3] %v46
    %s49 = smul.addr 4, 6
    %s50 = scalar_lea.vmem %s0, %s49
    %v51 = vld [vmem:[%s50] sm:%s3]
    %s52 = scalar_lea.vmem [#allocation0], 48
    %53 = vst [vmem:[%s52] sm:%s3] %v51
    %s54 = smul.addr 4, 5
    %s55 = scalar_lea.vmem %s0, %s54
    %v56 = vld [vmem:[%s55] sm:%s3]
    %s57 = scalar_lea.vmem [#allocation0], 40
    %58 = vst [vmem:[%s57] sm:%s3] %v56
    %s59 = smul.addr 4, 4
    %s60 = scalar_lea.vmem %s0, %s59
    %v61 = vld [vmem:[%s60] sm:%s3]
    %s62 = scalar_lea.vmem [#allocation0], 32
    %63 = vst [vmem:[%s62] sm:%s3] %v61
    %s64 = smul.addr 4, 3
    %s65 = scalar_lea.vmem %s0, %s64
    %v66 = vld [vmem:[%s65] sm:%s3]
    %s67 = scalar_lea.vmem [#allocation0], 24
    %68 = vst [vmem:[%s67] sm:%s3] %v66
    %s69 = smul.addr 4, 2
    %s70 = scalar_lea.vmem %s0, %s69
    %v71 = vld [vmem:[%s70] sm:%s3]
    %s72 = scalar_lea.vmem [#allocation0], 16
    %73 = vst [vmem:[%s72] sm:%s3] %v71
    %s74 = scalar_lea.vmem %s0, 4
    %v75 = vld [vmem:[%s74] sm:%s3]
    %s76 = scalar_lea.vmem [#allocation0], 8
    %77 = vst [vmem:[%s76] sm:%s3] %v75
    %v78 = vld [vmem:[%s0] sm:%s3]
    %79 = vst [vmem:[#allocation0] sm:%s3] %v78
    %v80 = vld [vmem:[#allocation0] ss:$8 sm:$0xf]
    %v81 = vld [vmem:[#allocation0] ss:$8 sm:$0xf0]
    %vm82 = vcmask 1047556
    %v83 = vsel %vm82, %v81, %v80
    %vm84 = vcmask 64512
    %85 = vst.msk [vmem:[%s1] sm:$0xff] %vm84, %v83
    %s86 = scalar_lea.vmem [#allocation0], 64
    %v87 = vld [vmem:[%s86] ss:$8 sm:$0xf]
    %s88 = scalar_lea.vmem [#allocation0], 64
    %v89 = vld [vmem:[%s88] ss:$8 sm:$0xf0]
    %vm90 = vcmask 1047556
    %v91 = vsel %vm90, %v89, %v87
    %vm92 = vcmask 64512
    %s93 = scalar_lea.vmem %s1, 8
    %94 = vst.msk [vmem:[%s93] sm:$0xff] %vm92, %v91
    %s95 = scalar_lea.vmem [#allocation0], 3
    %v96 = vld [vmem:[%s95] ss:$8 sm:$0xf]
    %s97 = scalar_lea.vmem [#allocation0], 3
    %v98 = vld [vmem:[%s97] ss:$8 sm:$0xf0]
    %vm99 = vcmask 1047556
    %v100 = vsel %vm99, %v98, %v96
    %101 = vrot.lane.b32.xlu0 %v100, 24
    %v102 = vpop.permute.xlu0 %101
    %vm103 = vcmask 261312
    %104 = vst.msk [vmem:[%s1] sm:$0xff] %vm103, %v102
    %s105 = scalar_lea.vmem [#allocation0], 67
    %v106 = vld [vmem:[%s105] ss:$8 sm:$0xf]
    %s107 = scalar_lea.vmem [#allocation0], 67
    %v108 = vld [vmem:[%s107] ss:$8 sm:$0xf0]
    %vm109 = vcmask 1047556
    %v110 = vsel %vm109, %v108, %v106
    %111 = vrot.lane.b32.xlu0 %v110, 24
    %v112 = vpop.permute.xlu0 %111
    %vm113 = vcmask 261312
    %s114 = scalar_lea.vmem %s1, 8
    %115 = vst.msk [vmem:[%s114] sm:$0xff] %vm113, %v112
    %s116 = scalar_lea.vmem [#allocation0], 2
    %v117 = vld [vmem:[%s116] ss:$8 sm:$0xf]
    %s118 = scalar_lea.vmem [#allocation0], 2
    %v119 = vld [vmem:[%s118] ss:$8 sm:$0xf0]
    %vm120 = vcmask 1047556
    %v121 = vsel %vm120, %v119, %v117
    %122 = vrot.lane.b32.xlu0 %v121, 16
    %v123 = vpop.permute.xlu0 %122
    %vm124 = vcmask 195712
    %125 = vst.msk [vmem:[%s1] sm:$0xff] %vm124, %v123
    %s126 = scalar_lea.vmem [#allocation0], 66
    %v127 = vld [vmem:[%s126] ss:$8 sm:$0xf]
    %s128 = scalar_lea.vmem [#allocation0], 66
    %v129 = vld [vmem:[%s128] ss:$8 sm:$0xf0]
    %vm130 = vcmask 1047556
    %v131 = vsel %vm130, %v129, %v127
    %132 = vrot.lane.b32.xlu0 %v131, 16
    %v133 = vpop.permute.xlu0 %132
    %vm134 = vcmask 195712
    %s135 = scalar_lea.vmem %s1, 8
    %136 = vst.msk [vmem:[%s135] sm:$0xff] %vm134, %v133
    %s137 = scalar_lea.vmem [#allocation0], 1
    %v138 = vld [vmem:[%s137] ss:$8 sm:$0xf]
    %s139 = scalar_lea.vmem [#allocation0], 1
    %v140 = vld [vmem:[%s139] ss:$8 sm:$0xf0]
    %vm141 = vcmask 1047556
    %v142 = vsel %vm141, %v140, %v138
    %143 = vrot.lane.b32.xlu0 %v142, 8
    %v144 = vpop.permute.xlu0 %143
    %vm145 = vcmask 130112
    %146 = vst.msk [vmem:[%s1] sm:$0xff] %vm145, %v144
    %s147 = scalar_lea.vmem [#allocation0], 65
    %v148 = vld [vmem:[%s147] ss:$8 sm:$0xf]
    %s149 = scalar_lea.vmem [#allocation0], 65
    %v150 = vld [vmem:[%s149] ss:$8 sm:$0xf0]
    %vm151 = vcmask 1047556
    %v152 = vsel %vm151, %v150, %v148
    %153 = vrot.lane.b32.xlu0 %v152, 8
    %v154 = vpop.permute.xlu0 %153
    %vm155 = vcmask 130112
    %s156 = scalar_lea.vmem %s1, 8
    %157 = vst.msk [vmem:[%s156] sm:$0xff] %vm155, %v154

// kernel: encoder_forward.1
$region0: #{encoder_forward.1}
  #allocation0 [shape = 'u32[]', space=smem, size = 0x4, offset = 0x4, fixed_abs, tag = 'smem constant byte address 0x4 - core index']
  #allocation1 [shape = 'u32[144,128]{1,0:T(1,128)}', space=vmem, size = 0x12000, scoped, tag = 'internal scratch']
  %s0 = inlined_call_operand.vmem [shape: f32[16,16], index: 0, kind: input, shape index: {}]
  %s1 = inlined_call_operand.vmem [shape: s32[16,32], index: 1, kind: input, shape index: {}]
  %s2 = inlined_call_operand.vmem [shape: f32[16,32], index: 2, kind: input, shape index: {}]
  %s3 = inlined_call_operand.vmem [shape: f32[32,32], index: 3, kind: input, shape index: {}]
  %s4 = inlined_call_operand.vmem [shape: f32[32,32], index: 4, kind: input, shape index: {}]
  %s5 = inlined_call_operand.vmem [shape: bf16[16,96], index: 5, kind: input, shape index: {}]
  %s6 = inlined_call_operand.vmem [shape: f32[1,96], index: 6, kind: input, shape index: {}]
  %s7 = inlined_call_operand.vmem [shape: bf16[96,96], index: 7, kind: input, shape index: {}]
  %s8 = inlined_call_operand.vmem [shape: f32[1,96], index: 8, kind: input, shape index: {}]
  %s9 = inlined_call_operand.vmem [shape: bf16[96,32], index: 9, kind: input, shape index: {}]
  %s10 = inlined_call_operand.vmem [shape: f32[1,32], index: 10, kind: input, shape index: {}]
  %s11 = inlined_call_operand.vmem [shape: f32[2,1,32], index: 11, kind: input, shape index: {}]
  %s12 = inlined_call_operand.vmem [shape: f32[2,1,32], index: 12, kind: input, shape index: {}]
  %s13 = inlined_call_operand.vmem [shape: bf16[2,32,32], index: 13, kind: input, shape index: {}]
  %s14 = inlined_call_operand.vmem [shape: bf16[2,32,32], index: 14, kind: input, shape index: {}]
  %s15 = inlined_call_operand.vmem [shape: bf16[2,32,32], index: 15, kind: input, shape index: {}]
  %s16 = inlined_call_operand.vmem [shape: bf16[2,32,32], index: 16, kind: input, shape index: {}]
  %s17 = inlined_call_operand.vmem [shape: f32[2,1,32], index: 17, kind: input, shape index: {}]
  %s18 = inlined_call_operand.vmem [shape: f32[2,1,32], index: 18, kind: input, shape index: {}]
  %s19 = inlined_call_operand.vmem [shape: f32[2,1,32], index: 19, kind: input, shape index: {}]
  %s20 = inlined_call_operand.vmem [shape: bf16[2,32,128], index: 20, kind: input, shape index: {}]
  %s21 = inlined_call_operand.vmem [shape: f32[2,1,128], index: 21, kind: input, shape index: {}]
  %s22 = inlined_call_operand.vmem [shape: bf16[2,128,32], index: 22, kind: input, shape index: {}]
  %s23 = inlined_call_operand.vmem [shape: f32[2,1,32], index: 23, kind: input, shape index: {}]
  %s24 = inlined_call_operand.vmem [shape: f32[1,32], index: 24, kind: input, shape index: {}]
  %s25 = inlined_call_operand.vmem [shape: f32[1,32], index: 25, kind: input, shape index: {}]
  %s26 = inlined_call_operand.hbm [shape: f32[16,32], index: 26, kind: output, shape index: {}]
  %s27 = sld [smem:[#allocation0]]
  $region114: #{encoder_forward.1} parent=0
    _
  %s29 = ssub.s32 1, %s27
  %s30 = scalar_select 0, %s29, %s27
  $region1: #{encoder_forward.1} parent=0
    #allocation2 [shape = 'u8[8192]{0}', space=vmem, size = 0x2000, scoped, tag = 'output window, operand 0, single buffered']
    #allocation3 [shape = 's32[1]{0}', space=sflag, size = 0x4, scoped, tag = 'scoped memory for encoder_forward.1']
    %31 = vsyncpa [#allocation3], 0
    // Predicated region
    $region2: #{encoder_forward.1} parent=1 // pred_check
      _
    $region3: #{encoder_forward.1} parent=1 // pred_check_branch
      %33 = sbr.rel (0) target = $region5
    $region4: #{encoder_forward.1} parent=1 // pred_region
      _
    $region5: #{encoder_forward.1} parent=1 // pred_fallthru
      _
    // Predicated region
    $region6: #{encoder_forward.1} parent=1 // pred_check
      _
    $region7: #{encoder_forward.1} parent=1 // pred_check_branch
      %35 = sbr.rel (0) target = $region9
    $region8: #{encoder_forward.1} parent=1 // pred_region
      _
    $region9: #{encoder_forward.1} parent=1 // pred_fallthru
      _
    // Predicated region
    $region10: #{encoder_forward.1} parent=1 // pred_check
      _
    $region11: #{encoder_forward.1} parent=1 // pred_check_branch
      %37 = sbr.rel (0) target = $region13
    $region12: #{encoder_forward.1} parent=1 // pred_region
      _
    $region13: #{encoder_forward.1} parent=1 // pred_fallthru
      _
    // Predicated region
    $region14: #{encoder_forward.1} parent=1 // pred_check
      _
    $region15: #{encoder_forward.1} parent=1 // pred_check_branch
      %39 = sbr.rel (0) target = $region17
    $region16: #{encoder_forward.1} parent=1 // pred_region
      _
    $region17: #{encoder_forward.1} parent=1 // pred_fallthru
      _
    // Predicated region
    $region18: #{encoder_forward.1} parent=1 // pred_check
      _
    $region19: #{encoder_forward.1} parent=1 // pred_check_branch
      %41 = sbr.rel (0) target = $region21
    $region20: #{encoder_forward.1} parent=1 // pred_region
      _
    $region21: #{encoder_forward.1} parent=1 // pred_fallthru
      _
    // Predicated region
    $region22: #{encoder_forward.1} parent=1 // pred_check
      _
    $region23: #{encoder_forward.1} parent=1 // pred_check_branch
      %43 = sbr.rel (0) target = $region25
    $region24: #{encoder_forward.1} parent=1 // pred_region
      _
    $region25: #{encoder_forward.1} parent=1 // pred_fallthru
      _
    // Predicated region
    $region26: #{encoder_forward.1} parent=1 // pred_check
      _
    $region27: #{encoder_forward.1} parent=1 // pred_check_branch
      %45 = sbr.rel (0) target = $region29
    $region28: #{encoder_forward.1} parent=1 // pred_region
      _
    $region29: #{encoder_forward.1} parent=1 // pred_fallthru
      _
    // Predicated region
    $region30: #{encoder_forward.1} parent=1 // pred_check
      _
    $region31: #{encoder_forward.1} parent=1 // pred_check_branch
      %47 = sbr.rel (0) target = $region33
    $region32: #{encoder_forward.1} parent=1 // pred_region
      _
    $region33: #{encoder_forward.1} parent=1 // pred_fallthru
      _
    // Predicated region
    $region34: #{encoder_forward.1} parent=1 // pred_check
      _
    $region35: #{encoder_forward.1} parent=1 // pred_check_branch
      %49 = sbr.rel (0) target = $region37
    $region36: #{encoder_forward.1} parent=1 // pred_region
      _
    $region37: #{encoder_forward.1} parent=1 // pred_fallthru
      _
    // Predicated region
    $region38: #{encoder_forward.1} parent=1 // pred_check
      _
    $region39: #{encoder_forward.1} parent=1 // pred_check_branch
      %51 = sbr.rel (0) target = $region41
    $region40: #{encoder_forward.1} parent=1 // pred_region
      _
    $region41: #{encoder_forward.1} parent=1 // pred_fallthru
      _
    // Predicated region
    $region42: #{encoder_forward.1} parent=1 // pred_check
      _
    $region43: #{encoder_forward.1} parent=1 // pred_check_branch
      %53 = sbr.rel (0) target = $region45
    $region44: #{encoder_forward.1} parent=1 // pred_region
      _
    $region45: #{encoder_forward.1} parent=1 // pred_fallthru
      _
    // Predicated region
    $region46: #{encoder_forward.1} parent=1 // pred_check
      _
    $region47: #{encoder_forward.1} parent=1 // pred_check_branch
      %55 = sbr.rel (0) target = $region49
    $region48: #{encoder_forward.1} parent=1 // pred_region
      _
    $region49: #{encoder_forward.1} parent=1 // pred_fallthru
      _
    // Predicated region
    $region50: #{encoder_forward.1} parent=1 // pred_check
      _
    $region51: #{encoder_forward.1} parent=1 // pred_check_branch
      %57 = sbr.rel (0) target = $region53
    $region52: #{encoder_forward.1} parent=1 // pred_region
      _
    $region53: #{encoder_forward.1} parent=1 // pred_fallthru
      _
    // Predicated region
    $region54: #{encoder_forward.1} parent=1 // pred_check
      _
    $region55: #{encoder_forward.1} parent=1 // pred_check_branch
      %59 = sbr.rel (0) target = $region57
    $region56: #{encoder_forward.1} parent=1 // pred_region
      _
    $region57: #{encoder_forward.1} parent=1 // pred_fallthru
      _
    // Predicated region
    $region58: #{encoder_forward.1} parent=1 // pred_check
      _
    $region59: #{encoder_forward.1} parent=1 // pred_check_branch
      %61 = sbr.rel (0) target = $region61
    $region60: #{encoder_forward.1} parent=1 // pred_region
      _
    $region61: #{encoder_forward.1} parent=1 // pred_fallthru
      _
    // Predicated region
    $region62: #{encoder_forward.1} parent=1 // pred_check
      _
    $region63: #{encoder_forward.1} parent=1 // pred_check_branch
      %63 = sbr.rel (0) target = $region65
    $region64: #{encoder_forward.1} parent=1 // pred_region
      _
    $region65: #{encoder_forward.1} parent=1 // pred_fallthru
      _
    // Predicated region
    $region66: #{encoder_forward.1} parent=1 // pred_check
      _
    $region67: #{encoder_forward.1} parent=1 // pred_check_branch
      %65 = sbr.rel (0) target = $region69
    $region68: #{encoder_forward.1} parent=1 // pred_region
      _
    $region69: #{encoder_forward.1} parent=1 // pred_fallthru
      _
    // Predicated region
    $region70: #{encoder_forward.1} parent=1 // pred_check
      _
    $region71: #{encoder_forward.1} parent=1 // pred_check_branch
      %67 = sbr.rel (0) target = $region73
    $region72: #{encoder_forward.1} parent=1 // pred_region
      _
    $region73: #{encoder_forward.1} parent=1 // pred_fallthru
      _
    // Predicated region
    $region74: #{encoder_forward.1} parent=1 // pred_check
      _
    $region75: #{encoder_forward.1} parent=1 // pred_check_branch
      %69 = sbr.rel (0) target = $region77
    $region76: #{encoder_forward.1} parent=1 // pred_region
      _
    $region77: #{encoder_forward.1} parent=1 // pred_fallthru
      _
    // Predicated region
    $region78: #{encoder_forward.1} parent=1 // pred_check
      _
    $region79: #{encoder_forward.1} parent=1 // pred_check_branch
      %71 = sbr.rel (0) target = $region81
    $region80: #{encoder_forward.1} parent=1 // pred_region
      _
    $region81: #{encoder_forward.1} parent=1 // pred_fallthru
      _
    // Predicated region
    $region82: #{encoder_forward.1} parent=1 // pred_check
      _
    $region83: #{encoder_forward.1} parent=1 // pred_check_branch
      %73 = sbr.rel (0) target = $region85
    $region84: #{encoder_forward.1} parent=1 // pred_region
      _
    $region85: #{encoder_forward.1} parent=1 // pred_fallthru
      _
    // Predicated region
    $region86: #{encoder_forward.1} parent=1 // pred_check
      _
    $region87: #{encoder_forward.1} parent=1 // pred_check_branch
      %75 = sbr.rel (0) target = $region89
    $region88: #{encoder_forward.1} parent=1 // pred_region
      _
    $region89: #{encoder_forward.1} parent=1 // pred_fallthru
      _
    // Predicated region
    $region90: #{encoder_forward.1} parent=1 // pred_check
      _
    $region91: #{encoder_forward.1} parent=1 // pred_check_branch
      %77 = sbr.rel (0) target = $region93
    $region92: #{encoder_forward.1} parent=1 // pred_region
      _
    $region93: #{encoder_forward.1} parent=1 // pred_fallthru
      _
    // Predicated region
    $region94: #{encoder_forward.1} parent=1 // pred_check
      _
    $region95: #{encoder_forward.1} parent=1 // pred_check_branch
      %79 = sbr.rel (0) target = $region97
    $region96: #{encoder_forward.1} parent=1 // pred_region
      _
    $region97: #{encoder_forward.1} parent=1 // pred_fallthru
      _
    // Predicated region
    $region98: #{encoder_forward.1} parent=1 // pred_check
      _
    $region99: #{encoder_forward.1} parent=1 // pred_check_branch
      %81 = sbr.rel (0) target = $region101
    $region100: #{encoder_forward.1} parent=1 // pred_region
      _
    $region101: #{encoder_forward.1} parent=1 // pred_fallthru
      _
    // Predicated region
    $region102: #{encoder_forward.1} parent=1 // pred_check
      _
    $region103: #{encoder_forward.1} parent=1 // pred_check_branch
      %83 = sbr.rel (0) target = $region105
    $region104: #{encoder_forward.1} parent=1 // pred_region
      _
    $region105: #{encoder_forward.1} parent=1 // pred_fallthru
      _
    %v85 = vld [vmem:[%s0] sm:$0xff]
    %v86 = vld [vmem:[%s0 + $0x8] sm:$0xff]
    %v87 = vld [vmem:[%s5] sm:$0xf]
    %v88 = vld [vmem:[%s5 + $0x4] sm:$0xf]
    %v89 = vld [vmem:[%s6] sm:$0x1]
    %v90 = vpack.c.bf16 %v86, %v85
    %v92 = vlaneseq
    %v93 = vshrl.u32 %v92, 7
    %v94 = vsub.s32 0, %v93
    %v95 = vrot.slane %v89, %v94
    %v99 = vunpack.c.l.b16 %v87
    %v100 = vunpack.c.l.b16 %v88
    %v101 = vpack.c.b16 %v100, %v99
    %vm103 = vcmask 130048
    %v105 = vsel %vm103, %v90, 0
    %107 = vmatprep.subr.bf16.mxu0 0
    %108 = vmatpush1.bf16.msra.mxu0 %v101
    %109 = vmatprep.subr.bf16.mxu0 0
    %110 = vmatpush1.bf16.msra.mxu0 0
    %111 = vmatprep.subr.bf16.mxu0 0
    %112 = vmatpush1.bf16.msra.mxu0 0
    %113 = vmatprep.subr.bf16.mxu0 0
    %114 = vmatpush1.bf16.msra.mxu0 0
    %115 = vmatprep.subr.bf16.mxu0 0
    %116 = vmatpush1.bf16.msra.mxu0 0
    %117 = vmatprep.subr.bf16.mxu0 0
    %118 = vmatpush1.bf16.msra.mxu0 0
    %119 = vmatprep.subr.bf16.mxu0 0
    %120 = vmatpush1.bf16.msra.mxu0 0
    %121 = vmatprep.subr.bf16.mxu0 0
    %122 = vmatpush1.bf16.msra.mxu0 0
    %123 = vmatprep.subr.bf16.mxu0 0
    %124 = vmatpush1.bf16.msra.mxu0 0
    %125 = vmatprep.subr.bf16.mxu0 0
    %126 = vmatpush1.bf16.msra.mxu0 0
    %127 = vmatprep.subr.bf16.mxu0 0
    %128 = vmatpush1.bf16.msra.mxu0 0
    %129 = vmatprep.subr.bf16.mxu0 0
    %130 = vmatpush1.bf16.msra.mxu0 0
    %131 = vmatprep.subr.bf16.mxu0 0
    %132 = vmatpush1.bf16.msra.mxu0 0
    %133 = vmatprep.subr.bf16.mxu0 0
    %134 = vmatpush1.bf16.msra.mxu0 0
    %135 = vmatprep.subr.bf16.mxu0 0
    %136 = vmatpush1.bf16.msra.mxu0 0
    %137 = vmatprep.subr.bf16.mxu0 0
    %138 = vmatpush1.bf16.msra.mxu0 0
    %139 = vmatprep.mubr.bf16.mxu0 0
    %140 = vmatmul.mubr.bf16.gmra.mrb[0].mxu0 %v105
    %v141 = vpop.f32.mrb[0].mxu0
    %v142 = vadd.f32 %v95, %v141
    %v143 = vpop.f32.mrb[0].mxu0
    %v144 = vpop.f32.mrb[0].mxu0
    %v145 = vadd.f32 %v95, %v144
    %v146 = vpop.f32.mrb[0].mxu0
    %147 = vdwg.mxu0
    %v148 = vmax.f32 %v142, 0.0
    %v149 = vmax.f32 %v145, 0.0
    %v150 = vld [vmem:[%s7] sm:$0xf]
    %v151 = vld [vmem:[%s7 + $0x4] sm:$0xf]
    %v152 = vld [vmem:[%s7 + $0x8] sm:$0xf]
    %v153 = vld [vmem:[%s7 + $0xc] sm:$0xf]
    %v154 = vld [vmem:[%s7 + $0x10] sm:$0xf]
    %v155 = vld [vmem:[%s7 + $0x14] sm:$0xf]
    %v156 = vld [vmem:[%s7 + $0x18] sm:$0xf]
    %v157 = vld [vmem:[%s7 + $0x1c] sm:$0xf]
    %v158 = vld [vmem:[%s7 + $0x20] sm:$0xf]
    %v159 = vld [vmem:[%s7 + $0x24] sm:$0xf]
    %v160 = vld [vmem:[%s7 + $0x28] sm:$0xf]
    %v161 = vld [vmem:[%s7 + $0x2c] sm:$0xf]
    %v162 = vld [vmem:[%s8] sm:$0x1]
    %v163 = vpack.c.bf16 %v149, %v148
    %v165 = vlaneseq
    %v166 = vshrl.u32 %v165, 7
    %v167 = vsub.s32 0, %v166
    %v168 = vrot.slane %v162, %v167
    %v182 = vunpack.c.l.b16 %v150
    %v183 = vunpack.c.l.b16 %v151
    %v184 = vunpack.c.l.b16 %v152
    %v185 = vunpack.c.l.b16 %v153
    %v186 = vunpack.c.l.b16 %v154
    %v187 = vunpack.c.l.b16 %v155
    %v188 = vunpack.c.l.b16 %v156
    %v189 = vunpack.c.l.b16 %v157
    %v190 = vunpack.c.l.b16 %v158
    %v191 = vunpack.c.l.b16 %v159
    %v192 = vunpack.c.l.b16 %v160
    %v193 = vunpack.c.l.b16 %v161
    %v194 = vpack.c.b16 %v183, %v182
    %v195 = vpack.c.b16 %v185, %v184
    %v196 = vpack.c.b16 %v187, %v186
    %v197 = vpack.c.b16 %v189, %v188
    %v198 = vpack.c.b16 %v191, %v190
    %v199 = vpack.c.b16 %v193, %v192
    %vm206 = vcmask 785408
    %v208 = vsel %vm206, %v163, 0
    %210 = vmatprep.subr.bf16.mxu0 0
    %211 = vmatpush1.bf16.msra.mxu0 %v194
    %212 = vmatprep.subr.bf16.mxu0 0
    %213 = vmatpush1.bf16.msra.mxu0 %v195
    %214 = vmatprep.subr.bf16.mxu0 0
    %215 = vmatpush1.bf16.msra.mxu0 %v196
    %216 = vmatprep.subr.bf16.mxu0 0
    %217 = vmatpush1.bf16.msra.mxu0 %v197
    %218 = vmatprep.subr.bf16.mxu0 0
    %219 = vmatpush1.bf16.msra.mxu0 %v198
    %220 = vmatprep.subr.bf16.mxu0 0
    %221 = vmatpush1.bf16.msra.mxu0 %v199
    %222 = vmatprep.subr.bf16.mxu0 0
    %223 = vmatpush1.bf16.msra.mxu0 0
    %224 = vmatprep.subr.bf16.mxu0 0
    %225 = vmatpush1.bf16.msra.mxu0 0
    %226 = vmatprep.subr.bf16.mxu0 0
    %227 = vmatpush1.bf16.msra.mxu0 0
    %228 = vmatprep.subr.bf16.mxu0 0
    %229 = vmatpush1.bf16.msra.mxu0 0
    %230 = vmatprep.subr.bf16.mxu0 0
    %231 = vmatpush1.bf16.msra.mxu0 0
    %232 = vmatprep.subr.bf16.mxu0 0
    %233 = vmatpush1.bf16.msra.mxu0 0
    %234 = vmatprep.subr.bf16.mxu0 0
    %235 = vmatpush1.bf16.msra.mxu0 0
    %236 = vmatprep.subr.bf16.mxu0 0
    %237 = vmatpush1.bf16.msra.mxu0 0
    %238 = vmatprep.subr.bf16.mxu0 0
    %239 = vmatpush1.bf16.msra.mxu0 0
    %240 = vmatprep.subr.bf16.mxu0 0
    %241 = vmatpush1.bf16.msra.mxu0 0
    %242 = vmatprep.mubr.bf16.mxu0 0
    %243 = vmatmul.mubr.bf16.gmra.mrb[0].mxu0 %v208
    %v244 = vpop.f32.mrb[0].mxu0
    %v245 = vadd.f32 %v168, %v244
    %v246 = vpop.f32.mrb[0].mxu0
    %v247 = vpop.f32.mrb[0].mxu0
    %v248 = vadd.f32 %v168, %v247
    %v249 = vpop.f32.mrb[0].mxu0
    %250 = vdwg.mxu0
    %v251 = vmax.f32 %v245, 0.0
    %v252 = vmax.f32 %v248, 0.0
    %v253 = vld [vmem:[%s9] sm:$0xf]
    %v254 = vld [vmem:[%s9 + $0x4] sm:$0xf]
    %v255 = vld [vmem:[%s9 + $0x8] sm:$0xf]
    %v256 = vld [vmem:[%s9 + $0xc] sm:$0xf]
    %v257 = vld [vmem:[%s9 + $0x10] sm:$0xf]
    %v258 = vld [vmem:[%s9 + $0x14] sm:$0xf]
    %v259 = vld [vmem:[%s9 + $0x18] sm:$0xf]
    %v260 = vld [vmem:[%s9 + $0x1c] sm:$0xf]
    %v261 = vld [vmem:[%s9 + $0x20] sm:$0xf]
    %v262 = vld [vmem:[%s9 + $0x24] sm:$0xf]
    %v263 = vld [vmem:[%s9 + $0x28] sm:$0xf]
    %v264 = vld [vmem:[%s9 + $0x2c] sm:$0xf]
    %v265 = vld [vmem:[%s10] sm:$0x1]
    %v266 = vpack.c.bf16 %v252, %v251
    %v268 = vlaneseq
    %v269 = vshrl.u32 %v268, 7
    %v270 = vsub.s32 0, %v269
    %v271 = vrot.slane %v265, %v270
    %v285 = vunpack.c.l.b16 %v253
    %v286 = vunpack.c.l.b16 %v254
    %v287 = vunpack.c.l.b16 %v255
    %v288 = vunpack.c.l.b16 %v256
    %v289 = vunpack.c.l.b16 %v257
    %v290 = vunpack.c.l.b16 %v258
    %v291 = vunpack.c.l.b16 %v259
    %v292 = vunpack.c.l.b16 %v260
    %v293 = vunpack.c.l.b16 %v261
    %v294 = vunpack.c.l.b16 %v262
    %v295 = vunpack.c.l.b16 %v263
    %v296 = vunpack.c.l.b16 %v264
    %v297 = vpack.c.b16 %v286, %v285
    %v298 = vpack.c.b16 %v288, %v287
    %v299 = vpack.c.b16 %v290, %v289
    %v300 = vpack.c.b16 %v292, %v291
    %v301 = vpack.c.b16 %v294, %v293
    %v302 = vpack.c.b16 %v296, %v295
    %v310 = vsel %vm206, %v266, 0
    %312 = vmatprep.subr.bf16.mxu0 0
    %313 = vmatpush1.bf16.msra.mxu0 %v297
    %314 = vmatprep.subr.bf16.mxu0 0
    %315 = vmatpush1.bf16.msra.mxu0 %v298
    %316 = vmatprep.subr.bf16.mxu0 0
    %317 = vmatpush1.bf16.msra.mxu0 %v299
    %318 = vmatprep.subr.bf16.mxu0 0
    %319 = vmatpush1.bf16.msra.mxu0 %v300
    %320 = vmatprep.subr.bf16.mxu0 0
    %321 = vmatpush1.bf16.msra.mxu0 %v301
    %322 = vmatprep.subr.bf16.mxu0 0
    %323 = vmatpush1.bf16.msra.mxu0 %v302
    %324 = vmatprep.subr.bf16.mxu0 0
    %325 = vmatpush1.bf16.msra.mxu0 0
    %326 = vmatprep.subr.bf16.mxu0 0
    %327 = vmatpush1.bf16.msra.mxu0 0
    %328 = vmatprep.subr.bf16.mxu0 0
    %329 = vmatpush1.bf16.msra.mxu0 0
    %330 = vmatprep.subr.bf16.mxu0 0
    %331 = vmatpush1.bf16.msra.mxu0 0
    %332 = vmatprep.subr.bf16.mxu0 0
    %333 = vmatpush1.bf16.msra.mxu0 0
    %334 = vmatprep.subr.bf16.mxu0 0
    %335 = vmatpush1.bf16.msra.mxu0 0
    %336 = vmatprep.subr.bf16.mxu0 0
    %337 = vmatpush1.bf16.msra.mxu0 0
    %338 = vmatprep.subr.bf16.mxu0 0
    %339 = vmatpush1.bf16.msra.mxu0 0
    %340 = vmatprep.subr.bf16.mxu0 0
    %341 = vmatpush1.bf16.msra.mxu0 0
    %342 = vmatprep.subr.bf16.mxu0 0
    %343 = vmatpush1.bf16.msra.mxu0 0
    %344 = vmatprep.mubr.bf16.mxu0 0
    %345 = vmatmul.mubr.bf16.gmra.mrb[0].mxu0 %v310
    %v346 = vpop.f32.mrb[0].mxu0
    %v347 = vadd.f32 %v271, %v346
    %v348 = vpop.f32.mrb[0].mxu0
    %v349 = vpop.f32.mrb[0].mxu0
    %v350 = vadd.f32 %v271, %v349
    %v351 = vpop.f32.mrb[0].mxu0
    %352 = vdwg.mxu0
    %v353 = vld [vmem:[%s2] sm:$0xff]
    %v354 = vld [vmem:[%s2 + $0x8] sm:$0xff]
    %v355 = vadd.f32 %v347, %v353
    %v356 = vadd.f32 %v350, %v354
    %v357 = vld [vmem:[%s1] sm:$0xff]
    %v358 = vld [vmem:[%s1 + $0x8] sm:$0xff]
    %vm359 = vcmp.ne.s32.totalorder %v357, 0
    %vm360 = vcmp.ne.s32.totalorder %v358, 0
    %v361 = vld [vmem:[%s3] sm:$0xff]
    %v362 = vld [vmem:[%s3 + $0x8] sm:$0xff]
    %v363 = vld [vmem:[%s3 + $0x10] sm:$0xff]
    %v364 = vld [vmem:[%s3 + $0x18] sm:$0xff]
    %v365 = vld [vmem:[%s4] sm:$0xff]
    %v366 = vld [vmem:[%s4 + $0x8] sm:$0xff]
    %v367 = vld [vmem:[%s4 + $0x10] sm:$0xff]
    %v368 = vld [vmem:[%s4 + $0x18] sm:$0xff]
    %v369 = vld [vmem:[%s11] sm:$0x1]
    %v370 = vld [vmem:[%s12] sm:$0x1]
    %vm371 = vcmask 261120
    %v372 = vsel %vm371, %v355, 0.0
    %373 = vadd.xlane.f32.xlu0 %v372
    %v374 = vpop.xlane.xlu0 %373
    %v375 = vsel %vm371, %v356, 0.0
    %376 = vadd.xlane.f32.xlu0 %v375
    %v377 = vpop.xlane.xlu0 %376
    %v378 = vrcp.pop 32.0
    %v379 = vmul.f32 %v374, %v378
    %v380 = vmul.f32 %v377, %v378
    %v381 = vsub.f32 %v355, %v379
    %v382 = vsub.f32 %v356, %v380
    %v383 = vmul.f32 %v381, %v381
    %v384 = vmul.f32 %v382, %v382
    %v385 = vsel %vm371, %v383, 0.0
    %386 = vadd.xlane.f32.xlu0 %v385
    %v387 = vpop.xlane.xlu0 %386
    %v388 = vsel %vm371, %v384, 0.0
    %389 = vadd.xlane.f32.xlu0 %v388
    %v390 = vpop.xlane.xlu0 %389
    %v391 = vmul.f32 %v387, %v378
    %v392 = vmul.f32 %v390, %v378
    %v393 = vadd.f32 %v391, 1e-05
    %v394 = vadd.f32 %v392, 1e-05
    %v395 = vrsqrt.pop %v393
    %v396 = vrsqrt.pop %v394
    %v397 = vmul.f32 %v381, %v395
    %v398 = vmul.f32 %v382, %v396
    %v400 = vlaneseq
    %v401 = vshrl.u32 %v400, 7
    %v402 = vsub.s32 0, %v401
    %v403 = vrot.slane %v369, %v402
    %v405 = vmul.f32 %v397, %v403
    %v406 = vmul.f32 %v398, %v403
    %v408 = vlaneseq
    %v409 = vshrl.u32 %v408, 7
    %v410 = vsub.s32 0, %v409
    %v411 = vrot.slane %v370, %v410
    %v413 = vadd.f32 %v405, %v411
    %v414 = vadd.f32 %v406, %v411
    %v415 = vld [vmem:[%s13] sm:$0xf]
    %v416 = vld [vmem:[%s13 + $0x4] sm:$0xf]
    %v417 = vld [vmem:[%s13 + $0x8] sm:$0xf]
    %v418 = vld [vmem:[%s13 + $0xc] sm:$0xf]
    %v419 = vpack.c.bf16 %v414, %v413
    %v424 = vunpack.c.l.b16 %v415
    %v425 = vunpack.c.l.b16 %v416
    %v426 = vunpack.c.l.b16 %v417
    %v427 = vunpack.c.l.b16 %v418
    %v428 = vpack.c.b16 %v425, %v424
    %v429 = vpack.c.b16 %v427, %v426
    %v433 = vsel %vm371, %v419, 0
    %435 = vmatprep.subr.bf16.mxu0 0
    %436 = vmatpush1.bf16.msra.mxu0 %v428
    %437 = vmatprep.subr.bf16.mxu0 0
    %438 = vmatpush1.bf16.msra.mxu0 %v429
    %439 = vmatprep.subr.bf16.mxu0 0
    %440 = vmatpush1.bf16.msra.mxu0 0
    %441 = vmatprep.subr.bf16.mxu0 0
    %442 = vmatpush1.bf16.msra.mxu0 0
    %443 = vmatprep.subr.bf16.mxu0 0
    %444 = vmatpush1.bf16.msra.mxu0 0
    %445 = vmatprep.subr.bf16.mxu0 0
    %446 = vmatpush1.bf16.msra.mxu0 0
    %447 = vmatprep.subr.bf16.mxu0 0
    %448 = vmatpush1.bf16.msra.mxu0 0
    %449 = vmatprep.subr.bf16.mxu0 0
    %450 = vmatpush1.bf16.msra.mxu0 0
    %451 = vmatprep.subr.bf16.mxu0 0
    %452 = vmatpush1.bf16.msra.mxu0 0
    %453 = vmatprep.subr.bf16.mxu0 0
    %454 = vmatpush1.bf16.msra.mxu0 0
    %455 = vmatprep.subr.bf16.mxu0 0
    %456 = vmatpush1.bf16.msra.mxu0 0
    %457 = vmatprep.subr.bf16.mxu0 0
    %458 = vmatpush1.bf16.msra.mxu0 0
    %459 = vmatprep.subr.bf16.mxu0 0
    %460 = vmatpush1.bf16.msra.mxu0 0
    %461 = vmatprep.subr.bf16.mxu0 0
    %462 = vmatpush1.bf16.msra.mxu0 0
    %463 = vmatprep.subr.bf16.mxu0 0
    %464 = vmatpush1.bf16.msra.mxu0 0
    %465 = vmatprep.subr.bf16.mxu0 0
    %466 = vmatpush1.bf16.msra.mxu0 0
    %467 = vmatprep.mubr.bf16.mxu0 0
    %468 = vmatmul.mubr.bf16.gmra.mrb[0].mxu0 %v433
    %v469 = vpop.f32.mrb[0].mxu0
    %v470 = vadd.f32 0.0, %v469
    %v471 = vpop.f32.mrb[0].mxu0
    %v472 = vpop.f32.mrb[0].mxu0
    %v473 = vadd.f32 0.0, %v472
    %v474 = vpop.f32.mrb[0].mxu0
    %475 = vdwg.mxu0
    %v476 = vpack.c.bf16 %v470, %v470
    %v477 = vpack.c.bf16 %v473, %v473
    %v478 = vld [vmem:[%s14] sm:$0xf]
    %v479 = vld [vmem:[%s14 + $0x4] sm:$0xf]
    %v480 = vld [vmem:[%s14 + $0x8] sm:$0xf]
    %v481 = vld [vmem:[%s14 + $0xc] sm:$0xf]
    %v486 = vunpack.c.l.b16 %v478
    %v487 = vunpack.c.l.b16 %v479
    %v488 = vunpack.c.l.b16 %v480
    %v489 = vunpack.c.l.b16 %v481
    %v490 = vpack.c.b16 %v487, %v486
    %v491 = vpack.c.b16 %v489, %v488
    %494 = vmatprep.subr.bf16.mxu0 0
    %495 = vmatpush1.bf16.msra.mxu0 %v490
    %496 = vmatprep.subr.bf16.mxu0 0
    %497 = vmatpush1.bf16.msra.mxu0 %v491
    %498 = vmatprep.subr.bf16.mxu0 0
    %499 = vmatpush1.bf16.msra.mxu0 0
    %500 = vmatprep.subr.bf16.mxu0 0
    %501 = vmatpush1.bf16.msra.mxu0 0
    %502 = vmatprep.subr.bf16.mxu0 0
    %503 = vmatpush1.bf16.msra.mxu0 0
    %504 = vmatprep.subr.bf16.mxu0 0
    %505 = vmatpush1.bf16.msra.mxu0 0
    %506 = vmatprep.subr.bf16.mxu0 0
    %507 = vmatpush1.bf16.msra.mxu0 0
    %508 = vmatprep.subr.bf16.mxu0 0
    %509 = vmatpush1.bf16.msra.mxu0 0
    %510 = vmatprep.subr.bf16.mxu0 0
    %511 = vmatpush1.bf16.msra.mxu0 0
    %512 = vmatprep.subr.bf16.mxu0 0
    %513 = vmatpush1.bf16.msra.mxu0 0
    %514 = vmatprep.subr.bf16.mxu0 0
    %515 = vmatpush1.bf16.msra.mxu0 0
    %516 = vmatprep.subr.bf16.mxu0 0
    %517 = vmatpush1.bf16.msra.mxu0 0
    %518 = vmatprep.subr.bf16.mxu0 0
    %519 = vmatpush1.bf16.msra.mxu0 0
    %520 = vmatprep.subr.bf16.mxu0 0
    %521 = vmatpush1.bf16.msra.mxu0 0
    %522 = vmatprep.subr.bf16.mxu0 0
    %523 = vmatpush1.bf16.msra.mxu0 0
    %524 = vmatprep.subr.bf16.mxu0 0
    %525 = vmatpush1.bf16.msra.mxu0 0
    %526 = vmatprep.mubr.bf16.mxu0 0
    %527 = vmatmul.mubr.bf16.gmra.mrb[0].mxu0 %v433
    %v528 = vpop.f32.mrb[0].mxu0
    %v529 = vadd.f32 0.0, %v528
    %v530 = vpop.f32.mrb[0].mxu0
    %v531 = vpop.f32.mrb[0].mxu0
    %v532 = vadd.f32 0.0, %v531
    %v533 = vpop.f32.mrb[0].mxu0
    %534 = vdwg.mxu0
    %v535 = vld [vmem:[%s15] sm:$0xf]
    %v536 = vld [vmem:[%s15 + $0x4] sm:$0xf]
    %v537 = vld [vmem:[%s15 + $0x8] sm:$0xf]
    %v538 = vld [vmem:[%s15 + $0xc] sm:$0xf]
    %v543 = vunpack.c.l.b16 %v535
    %v544 = vunpack.c.l.b16 %v536
    %v545 = vunpack.c.l.b16 %v537
    %v546 = vunpack.c.l.b16 %v538
    %v547 = vpack.c.b16 %v544, %v543
    %v548 = vpack.c.b16 %v546, %v545
    %551 = vmatprep.subr.bf16.mxu0 0
    %552 = vmatpush1.bf16.msra.mxu0 %v547
    %553 = vmatprep.subr.bf16.mxu0 0
    %554 = vmatpush1.bf16.msra.mxu0 %v548
    %555 = vmatprep.subr.bf16.mxu0 0
    %556 = vmatpush1.bf16.msra.mxu0 0
    %557 = vmatprep.subr.bf16.mxu0 0
    %558 = vmatpush1.bf16.msra.mxu0 0
    %559 = vmatprep.subr.bf16.mxu0 0
    %560 = vmatpush1.bf16.msra.mxu0 0
    %561 = vmatprep.subr.bf16.mxu0 0
    %562 = vmatpush1.bf16.msra.mxu0 0
    %563 = vmatprep.subr.bf16.mxu0 0
    %564 = vmatpush1.bf16.msra.mxu0 0
    %565 = vmatprep.subr.bf16.mxu0 0
    %566 = vmatpush1.bf16.msra.mxu0 0
    %567 = vmatprep.subr.bf16.mxu0 0
    %568 = vmatpush1.bf16.msra.mxu0 0
    %569 = vmatprep.subr.bf16.mxu0 0
    %570 = vmatpush1.bf16.msra.mxu0 0
    %571 = vmatprep.subr.bf16.mxu0 0
    %572 = vmatpush1.bf16.msra.mxu0 0
    %573 = vmatprep.subr.bf16.mxu0 0
    %574 = vmatpush1.bf16.msra.mxu0 0
    %575 = vmatprep.subr.bf16.mxu0 0
    %576 = vmatpush1.bf16.msra.mxu0 0
    %577 = vmatprep.subr.bf16.mxu0 0
    %578 = vmatpush1.bf16.msra.mxu0 0
    %579 = vmatprep.subr.bf16.mxu0 0
    %580 = vmatpush1.bf16.msra.mxu0 0
    %581 = vmatprep.subr.bf16.mxu0 0
    %582 = vmatpush1.bf16.msra.mxu0 0
    %583 = vmatprep.mubr.bf16.mxu0 0
    %584 = vmatmul.mubr.bf16.gmra.mrb[0].mxu0 %v433
    %v585 = vpop.f32.mrb[0].mxu0
    %v586 = vadd.f32 0.0, %v585
    %v587 = vpop.f32.mrb[0].mxu0
    %v588 = vpop.f32.mrb[0].mxu0
    %v589 = vadd.f32 0.0, %v588
    %v590 = vpop.f32.mrb[0].mxu0
    %591 = vdwg.mxu0
    %v592 = vmul.f32 %v529, %v361
    %v593 = vmul.f32 %v529, %v362
    %v594 = vmul.f32 %v529, %v363
    %v595 = vmul.f32 %v529, %v364
    %v596 = vmul.f32 %v532, %v361
    %v597 = vmul.f32 %v532, %v362
    %v598 = vmul.f32 %v532, %v363
    %v599 = vmul.f32 %v532, %v364
    %v600 = vpack.c.bf16 %v593, %v592
    %v601 = vpack.c.bf16 %v595, %v594
    %v602 = vpack.c.bf16 %v597, %v596
    %v603 = vpack.c.bf16 %v599, %v598
    %v604 = vmul.f32 %v586, %v361
    %v605 = vmul.f32 %v586, %v362
    %v606 = vmul.f32 %v586, %v363
    %v607 = vmul.f32 %v586, %v364
    %v608 = vmul.f32 %v589, %v361
    %v609 = vmul.f32 %v589, %v362
    %v610 = vmul.f32 %v589, %v363
    %v611 = vmul.f32 %v589, %v364
    %v612 = vpack.c.bf16 %v605, %v604
    %v613 = vpack.c.bf16 %v607, %v606
    %v614 = vpack.c.bf16 %v609, %v608
    %v615 = vpack.c.bf16 %v611, %v610
    %v617 = vsel %vm371, %v476, 0
    %v620 = vsel %vm371, %v600, 0
    %v623 = vsel %vm371, %v601, 0
    %625 = vmatprep.subr.bf16.mxu0 0
    %626 = vmatpush1.bf16.xpose.msra.mxu0 %v620
    %627 = vmatprep.subr.bf16.mxu0 0
    %628 = vmatpush1.bf16.xpose.msra.mxu0 %v623
    %629 = vmatprep.subr.bf16.mxu0 0
    %630 = vmatpush1.bf16.xpose.msra.mxu0 0
    %631 = vmatprep.subr.bf16.mxu0 0
    %632 = vmatpush1.bf16.xpose.msra.mxu0 0
    %633 = vmatprep.subr.bf16.mxu0 0
    %634 = vmatpush1.bf16.xpose.msra.mxu0 0
    %635 = vmatprep.subr.bf16.mxu0 0
    %636 = vmatpush1.bf16.xpose.msra.mxu0 0
    %637 = vmatprep.subr.bf16.mxu0 0
    %638 = vmatpush1.bf16.xpose.msra.mxu0 0
    %639 = vmatprep.subr.bf16.mxu0 0
    %640 = vmatpush1.bf16.xpose.msra.mxu0 0
    %641 = vmatprep.subr.bf16.mxu0 0
    %642 = vmatpush1.bf16.xpose.msra.mxu0 0
    %643 = vmatprep.subr.bf16.mxu0 0
    %644 = vmatpush1.bf16.xpose.msra.mxu0 0
    %645 = vmatprep.subr.bf16.mxu0 0
    %646 = vmatpush1.bf16.xpose.msra.mxu0 0
    %647 = vmatprep.subr.bf16.mxu0 0
    %648 = vmatpush1.bf16.xpose.msra.mxu0 0
    %649 = vmatprep.subr.bf16.mxu0 0
    %650 = vmatpush1.bf16.xpose.msra.mxu0 0
    %651 = vmatprep.subr.bf16.mxu0 0
    %652 = vmatpush1.bf16.xpose.msra.mxu0 0
    %653 = vmatprep.subr.bf16.mxu0 0
    %654 = vmatpush1.bf16.xpose.msra.mxu0 0
    %655 = vmatprep.subr.bf16.mxu0 0
    %656 = vmatpush1.bf16.xpose.msra.mxu0 0
    %657 = vmatprep.mubr.bf16.mxu0 0
    %658 = vmatmul.mubr.bf16.gmra.mrb[0].mxu0 %v617
    %v659 = vpop.f32.mrb[0].mxu0
    %v660 = vadd.f32 0.0, %v659
    %v661 = vpop.f32.mrb[0].mxu0
    %v662 = vpop.f32.mrb[0].mxu0
    %v663 = vpop.f32.mrb[0].mxu0
    %664 = vdwg.mxu0
    %v666 = vsel %vm371, %v477, 0
    %v669 = vsel %vm371, %v602, 0
    %v672 = vsel %vm371, %v603, 0
    %674 = vmatprep.subr.bf16.mxu0 0
    %675 = vmatpush1.bf16.xpose.msra.mxu0 %v669
    %676 = vmatprep.subr.bf16.mxu0 0
    %677 = vmatpush1.bf16.xpose.msra.mxu0 %v672
    %678 = vmatprep.subr.bf16.mxu0 0
    %679 = vmatpush1.bf16.xpose.msra.mxu0 0
    %680 = vmatprep.subr.bf16.mxu0 0
    %681 = vmatpush1.bf16.xpose.msra.mxu0 0
    %682 = vmatprep.subr.bf16.mxu0 0
    %683 = vmatpush1.bf16.xpose.msra.mxu0 0
    %684 = vmatprep.subr.bf16.mxu0 0
    %685 = vmatpush1.bf16.xpose.msra.mxu0 0
    %686 = vmatprep.subr.bf16.mxu0 0
    %687 = vmatpush1.bf16.xpose.msra.mxu0 0
    %688 = vmatprep.subr.bf16.mxu0 0
    %689 = vmatpush1.bf16.xpose.msra.mxu0 0
    %690 = vmatprep.subr.bf16.mxu0 0
    %691 = vmatpush1.bf16.xpose.msra.mxu0 0
    %692 = vmatprep.subr.bf16.mxu0 0
    %693 = vmatpush1.bf16.xpose.msra.mxu0 0
    %694 = vmatprep.subr.bf16.mxu0 0
    %695 = vmatpush1.bf16.xpose.msra.mxu0 0
    %696 = vmatprep.subr.bf16.mxu0 0
    %697 = vmatpush1.bf16.xpose.msra.mxu0 0
    %698 = vmatprep.subr.bf16.mxu0 0
    %699 = vmatpush1.bf16.xpose.msra.mxu0 0
    %700 = vmatprep.subr.bf16.mxu0 0
    %701 = vmatpush1.bf16.xpose.msra.mxu0 0
    %702 = vmatprep.subr.bf16.mxu0 0
    %703 = vmatpush1.bf16.xpose.msra.mxu0 0
    %704 = vmatprep.subr.bf16.mxu0 0
    %705 = vmatpush1.bf16.xpose.msra.mxu0 0
    %706 = vmatprep.mubr.bf16.mxu0 0
    %707 = vmatmul.mubr.bf16.gmra.mrb[0].mxu0 %v666
    %v708 = vpop.f32.mrb[0].mxu0
    %v709 = vadd.f32 0.0, %v708
    %v710 = vpop.f32.mrb[0].mxu0
    %v711 = vpop.f32.mrb[0].mxu0
    %v712 = vpop.f32.mrb[0].mxu0
    %713 = vdwg.mxu0
    %v714 = vsel %vm359, %v660, -1e+09
    %v715 = vsel %vm360, %v709, -1e+09
    %v716 = vsel %vm371, %v714, -inf
    %717 = vmax.xlane.f32.xlu0 %v716
    %v718 = vpop.xlane.xlu0 %717
    %v719 = vsel %vm371, %v715, -inf
    %720 = vmax.xlane.f32.xlu0 %v719
    %v721 = vpop.xlane.xlu0 %720
    %v722 = vsub.f32 %v714, %v718
    %v723 = vsub.f32 %v715, %v721
    %v724 = vmul.f32 %v722, 1.442695
    %v725 = vpow.pop %v724
    %v726 = vmul.f32 %v723, 1.442695
    %v727 = vpow.pop %v726
    %v729 = vsel %vm371, %v725, 0
    %v732 = vsel %vm371, %v727, 0
    %734 = vmatprep.subr.mxu0 0.0
    %735 = vmatpush1.msra.mxu0 %v365
    %736 = vmatprep.subr.mxu0 0.0
    %737 = vmatpush1.msra.mxu0 %v366
    %738 = vmatprep.subr.mxu0 0.0
    %739 = vmatpush1.msra.mxu0 %v367
    %740 = vmatprep.subr.mxu0 0.0
    %741 = vmatpush1.msra.mxu0 %v368
    %742 = vmatprep.subr.mxu0 0.0
    %743 = vmatpush1.msra.mxu0 0.0
    %744 = vmatprep.subr.mxu0 0.0
    %745 = vmatpush1.msra.mxu0 0.0
    %746 = vmatprep.subr.mxu0 0.0
    %747 = vmatpush1.msra.mxu0 0.0
    %748 = vmatprep.subr.mxu0 0.0
    %749 = vmatpush1.msra.mxu0 0.0
    %750 = vmatprep.subr.mxu0 0.0
    %751 = vmatpush1.msra.mxu0 0.0
    %752 = vmatprep.subr.mxu0 0.0
    %753 = vmatpush1.msra.mxu0 0.0
    %754 = vmatprep.subr.mxu0 0.0
    %755 = vmatpush1.msra.mxu0 0.0
    %756 = vmatprep.subr.mxu0 0.0
    %757 = vmatpush1.msra.mxu0 0.0
    %758 = vmatprep.subr.mxu0 0.0
    %759 = vmatpush1.msra.mxu0 0.0
    %760 = vmatprep.subr.mxu0 0.0
    %761 = vmatpush1.msra.mxu0 0.0
    %762 = vmatprep.subr.mxu0 0.0
    %763 = vmatpush1.msra.mxu0 0.0
    %764 = vmatprep.subr.mxu0 0.0
    %765 = vmatpush1.msra.mxu0 0.0
    %766 = vmatprep.subr.mxu0 0.0
    %767 = vmatpush1.msra.mxu0 0.0
    %768 = vmatprep.subr.mxu0 0.0
    %769 = vmatpush1.msra.mxu0 0.0
    %770 = vmatprep.subr.mxu0 0.0
    %771 = vmatpush1.msra.mxu0 0.0
    %772 = vmatprep.subr.mxu0 0.0
    %773 = vmatpush1.msra.mxu0 0.0
    %774 = vmatprep.subr.mxu0 0.0
    %775 = vmatpush1.msra.mxu0 0.0
    %776 = vmatprep.subr.mxu0 0.0
    %777 = vmatpush1.msra.mxu0 0.0
    %778 = vmatprep.subr.mxu0 0.0
    %779 = vmatpush1.msra.mxu0 0.0
    %780 = vmatprep.subr.mxu0 0.0
    %781 = vmatpush1.msra.mxu0 0.0
    %782 = vmatprep.subr.mxu0 0.0
    %783 = vmatpush1.msra.mxu0 0.0
    %784 = vmatprep.subr.mxu0 0.0
    %785 = vmatpush1.msra.mxu0 0.0
    %786 = vmatprep.subr.mxu0 0.0
    %787 = vmatpush1.msra.mxu0 0.0
    %788 = vmatprep.subr.mxu0 0.0
    %789 = vmatpush1.msra.mxu0 0.0
    %790 = vmatprep.subr.mxu0 0.0
    %791 = vmatpush1.msra.mxu0 0.0
    %792 = vmatprep.subr.mxu0 0.0
    %793 = vmatpush1.msra.mxu0 0.0
    %794 = vmatprep.subr.mxu0 0.0
    %795 = vmatpush1.msra.mxu0 0.0
    %796 = vmatprep.subr.mxu0 0.0
    %797 = vmatpush1.msra.mxu0 0.0
    %798 = vmatprep.mubr.f32.mxu0 0.0
    %799 = vmatmul.mubr.f32.gmra.mrb[0].mxu0 %v729
    %v800 = vpop.f32.mrb[0].mxu0
    %v801 = vadd.f32 0.0, %v800
    %v802 = vpop.f32.mrb[0].mxu0
    %803 = vmatprep.mubr.f32.mxu0 0.0
    %804 = vmatmul.mubr.f32.gmra.mrb[0].mxu0 %v732
    %v805 = vpop.f32.mrb[0].mxu0
    %v806 = vadd.f32 0.0, %v805
    %v807 = vpop.f32.mrb[0].mxu0
    %808 = vdwg.mxu0
    %v809 = vrcp.pop %v801
    %v810 = vrcp.pop %v806
    %v811 = vmul.f32 %v725, %v809
    %v812 = vmul.f32 %v727, %v810
    %v813 = vpack.c.bf16 %v811, %v811
    %v814 = vpack.c.bf16 %v812, %v812
    %v816 = vsel %vm371, %v813, 0
    %818 = vmatprep.subr.bf16.mxu0 0
    %819 = vmatpush1.bf16.msra.mxu0 %v612
    %820 = vmatprep.subr.bf16.mxu0 0
    %821 = vmatpush1.bf16.msra.mxu0 %v613
    %822 = vmatprep.subr.bf16.mxu0 0
    %823 = vmatpush1.bf16.msra.mxu0 0
    %824 = vmatprep.subr.bf16.mxu0 0
    %825 = vmatpush1.bf16.msra.mxu0 0
    %826 = vmatprep.subr.bf16.mxu0 0
    %827 = vmatpush1.bf16.msra.mxu0 0
    %828 = vmatprep.subr.bf16.mxu0 0
    %829 = vmatpush1.bf16.msra.mxu0 0
    %830 = vmatprep.subr.bf16.mxu0 0
    %831 = vmatpush1.bf16.msra.mxu0 0
    %832 = vmatprep.subr.bf16.mxu0 0
    %833 = vmatpush1.bf16.msra.mxu0 0
    %834 = vmatprep.subr.bf16.mxu0 0
    %835 = vmatpush1.bf16.msra.mxu0 0
    %836 = vmatprep.subr.bf16.mxu0 0
    %837 = vmatpush1.bf16.msra.mxu0 0
    %838 = vmatprep.subr.bf16.mxu0 0
    %839 = vmatpush1.bf16.msra.mxu0 0
    %840 = vmatprep.subr.bf16.mxu0 0
    %841 = vmatpush1.bf16.msra.mxu0 0
    %842 = vmatprep.subr.bf16.mxu0 0
    %843 = vmatpush1.bf16.msra.mxu0 0
    %844 = vmatprep.subr.bf16.mxu0 0
    %845 = vmatpush1.bf16.msra.mxu0 0
    %846 = vmatprep.subr.bf16.mxu0 0
    %847 = vmatpush1.bf16.msra.mxu0 0
    %848 = vmatprep.subr.bf16.mxu0 0
    %849 = vmatpush1.bf16.msra.mxu0 0
    %850 = vmatprep.mubr.bf16.mxu0 0
    %851 = vmatmul.mubr.bf16.gmra.mrb[0].mxu0 %v816
    %v852 = vpop.f32.mrb[0].mxu0
    %v853 = vadd.f32 0.0, %v852
    %v854 = vpop.f32.mrb[0].mxu0
    %v855 = vpop.f32.mrb[0].mxu0
    %v856 = vpop.f32.mrb[0].mxu0
    %857 = vdwg.mxu0
    %v859 = vsel %vm371, %v814, 0
    %861 = vmatprep.subr.bf16.mxu0 0
    %862 = vmatpush1.bf16.msra.mxu0 %v614
    %863 = vmatprep.subr.bf16.mxu0 0
    %864 = vmatpush1.bf16.msra.mxu0 %v615
    %865 = vmatprep.subr.bf16.mxu0 0
    %866 = vmatpush1.bf16.msra.mxu0 0
    %867 = vmatprep.subr.bf16.mxu0 0
    %868 = vmatpush1.bf16.msra.mxu0 0
    %869 = vmatprep.subr.bf16.mxu0 0
    %870 = vmatpush1.bf16.msra.mxu0 0
    %871 = vmatprep.subr.bf16.mxu0 0
    %872 = vmatpush1.bf16.msra.mxu0 0
    %873 = vmatprep.subr.bf16.mxu0 0
    %874 = vmatpush1.bf16.msra.mxu0 0
    %875 = vmatprep.subr.bf16.mxu0 0
    %876 = vmatpush1.bf16.msra.mxu0 0
    %877 = vmatprep.subr.bf16.mxu0 0
    %878 = vmatpush1.bf16.msra.mxu0 0
    %879 = vmatprep.subr.bf16.mxu0 0
    %880 = vmatpush1.bf16.msra.mxu0 0
    %881 = vmatprep.subr.bf16.mxu0 0
    %882 = vmatpush1.bf16.msra.mxu0 0
    %883 = vmatprep.subr.bf16.mxu0 0
    %884 = vmatpush1.bf16.msra.mxu0 0
    %885 = vmatprep.subr.bf16.mxu0 0
    %886 = vmatpush1.bf16.msra.mxu0 0
    %887 = vmatprep.subr.bf16.mxu0 0
    %888 = vmatpush1.bf16.msra.mxu0 0
    %889 = vmatprep.subr.bf16.mxu0 0
    %890 = vmatpush1.bf16.msra.mxu0 0
    %891 = vmatprep.subr.bf16.mxu0 0
    %892 = vmatpush1.bf16.msra.mxu0 0
    %893 = vmatprep.mubr.bf16.mxu0 0
    %894 = vmatmul.mubr.bf16.gmra.mrb[0].mxu0 %v859
    %v895 = vpop.f32.mrb[0].mxu0
    %v896 = vadd.f32 0.0, %v895
    %v897 = vpop.f32.mrb[0].mxu0
    %v898 = vpop.f32.mrb[0].mxu0
    %v899 = vpop.f32.mrb[0].mxu0
    %900 = vdwg.mxu0
    %v901 = vld [vmem:[%s16] sm:$0xf]
    %v902 = vld [vmem:[%s16 + $0x4] sm:$0xf]
    %v903 = vld [vmem:[%s16 + $0x8] sm:$0xf]
    %v904 = vld [vmem:[%s16 + $0xc] sm:$0xf]
    %v905 = vld [vmem:[%s17] sm:$0x1]
    %v906 = vpack.c.bf16 %v896, %v853
    %v908 = vlaneseq
    %v909 = vshrl.u32 %v908, 7
    %v910 = vsub.s32 0, %v909
    %v911 = vrot.slane %v905, %v910
    %v917 = vunpack.c.l.b16 %v901
    %v918 = vunpack.c.l.b16 %v902
    %v919 = vunpack.c.l.b16 %v903
    %v920 = vunpack.c.l.b16 %v904
    %v921 = vpack.c.b16 %v918, %v917
    %v922 = vpack.c.b16 %v920, %v919
    %v926 = vsel %vm371, %v906, 0
    %928 = vmatprep.subr.bf16.mxu0 0
    %929 = vmatpush1.bf16.msra.mxu0 %v921
    %930 = vmatprep.subr.bf16.mxu0 0
    %931 = vmatpush1.bf16.msra.mxu0 %v922
    %932 = vmatprep.subr.bf16.mxu0 0
    %933 = vmatpush1.bf16.msra.mxu0 0
    %934 = vmatprep.subr.bf16.mxu0 0
    %935 = vmatpush1.bf16.msra.mxu0 0
    %936 = vmatprep.subr.bf16.mxu0 0
    %937 = vmatpush1.bf16.msra.mxu0 0
    %938 = vmatprep.subr.bf16.mxu0 0
    %939 = vmatpush1.bf16.msra.mxu0 0
    %940 = vmatprep.subr.bf16.mxu0 0
    %941 = vmatpush1.bf16.msra.mxu0 0
    %942 = vmatprep.subr.bf16.mxu0 0
    %943 = vmatpush1.bf16.msra.mxu0 0
    %944 = vmatprep.subr.bf16.mxu0 0
    %945 = vmatpush1.bf16.msra.mxu0 0
    %946 = vmatprep.subr.bf16.mxu0 0
    %947 = vmatpush1.bf16.msra.mxu0 0
    %948 = vmatprep.subr.bf16.mxu0 0
    %949 = vmatpush1.bf16.msra.mxu0 0
    %950 = vmatprep.subr.bf16.mxu0 0
    %951 = vmatpush1.bf16.msra.mxu0 0
    %952 = vmatprep.subr.bf16.mxu0 0
    %953 = vmatpush1.bf16.msra.mxu0 0
    %954 = vmatprep.subr.bf16.mxu0 0
    %955 = vmatpush1.bf16.msra.mxu0 0
    %956 = vmatprep.subr.bf16.mxu0 0
    %957 = vmatpush1.bf16.msra.mxu0 0
    %958 = vmatprep.subr.bf16.mxu0 0
    %959 = vmatpush1.bf16.msra.mxu0 0
    %960 = vmatprep.mubr.bf16.mxu0 0
    %961 = vmatmul.mubr.bf16.gmra.mrb[0].mxu0 %v926
    %v962 = vpop.f32.mrb[0].mxu0
    %v963 = vadd.f32 %v911, %v962
    %v964 = vpop.f32.mrb[0].mxu0
    %v965 = vpop.f32.mrb[0].mxu0
    %v966 = vadd.f32 %v911, %v965
    %v967 = vpop.f32.mrb[0].mxu0
    %968 = vdwg.mxu0
    %v969 = vadd.f32 %v355, %v963
    %v970 = vadd.f32 %v356, %v966
    %v971 = vld [vmem:[%s18] sm:$0x1]
    %v972 = vld [vmem:[%s19] sm:$0x1]
    %v973 = vsel %vm371, %v969, 0.0
    %974 = vadd.xlane.f32.xlu0 %v973
    %v975 = vpop.xlane.xlu0 %974
    %v976 = vsel %vm371, %v970, 0.0
    %977 = vadd.xlane.f32.xlu0 %v976
    %v978 = vpop.xlane.xlu0 %977
    %v979 = vmul.f32 %v975, %v378
    %v980 = vmul.f32 %v978, %v378
    %v981 = vsub.f32 %v969, %v979
    %v982 = vsub.f32 %v970, %v980
    %v983 = vmul.f32 %v981, %v981
    %v984 = vmul.f32 %v982, %v982
    %v985 = vsel %vm371, %v983, 0.0
    %986 = vadd.xlane.f32.xlu0 %v985
    %v987 = vpop.xlane.xlu0 %986
    %v988 = vsel %vm371, %v984, 0.0
    %989 = vadd.xlane.f32.xlu0 %v988
    %v990 = vpop.xlane.xlu0 %989
    %v991 = vmul.f32 %v987, %v378
    %v992 = vmul.f32 %v990, %v378
    %v993 = vadd.f32 %v991, 1e-05
    %v994 = vadd.f32 %v992, 1e-05
    %v995 = vrsqrt.pop %v993
    %v996 = vrsqrt.pop %v994
    %v997 = vmul.f32 %v981, %v995
    %v998 = vmul.f32 %v982, %v996
    %v1000 = vlaneseq
    %v1001 = vshrl.u32 %v1000, 7
    %v1002 = vsub.s32 0, %v1001
    %v1003 = vrot.slane %v971, %v1002
    %v1005 = vmul.f32 %v997, %v1003
    %v1006 = vmul.f32 %v998, %v1003
    %v1008 = vlaneseq
    %v1009 = vshrl.u32 %v1008, 7
    %v1010 = vsub.s32 0, %v1009
    %v1011 = vrot.slane %v972, %v1010
    %v1013 = vadd.f32 %v1005, %v1011
    %v1014 = vadd.f32 %v1006, %v1011
    %v1015 = vld [vmem:[%s20] sm:$0xf]
    %v1016 = vld [vmem:[%s20 + $0x4] sm:$0xf]
    %v1017 = vld [vmem:[%s20 + $0x8] sm:$0xf]
    %v1018 = vld [vmem:[%s20 + $0xc] sm:$0xf]
    %v1019 = vld [vmem:[%s21] sm:$0x1]
    %v1020 = vpack.c.bf16 %v1014, %v1013
    %v1022 = vlaneseq
    %v1023 = vshrl.u32 %v1022, 7
    %v1024 = vsub.s32 0, %v1023
    %v1025 = vrot.slane %v1019, %v1024
    %v1031 = vunpack.c.l.b16 %v1015
    %v1032 = vunpack.c.l.b16 %v1016
    %v1033 = vunpack.c.l.b16 %v1017
    %v1034 = vunpack.c.l.b16 %v1018
    %v1035 = vpack.c.b16 %v1032, %v1031
    %v1036 = vpack.c.b16 %v1034, %v1033
    %v1040 = vsel %vm371, %v1020, 0
    %1042 = vmatprep.subr.bf16.mxu0 0
    %1043 = vmatpush1.bf16.msra.mxu0 %v1035
    %1044 = vmatprep.subr.bf16.mxu0 0
    %1045 = vmatpush1.bf16.msra.mxu0 %v1036
    %1046 = vmatprep.subr.bf16.mxu0 0
    %1047 = vmatpush1.bf16.msra.mxu0 0
    %1048 = vmatprep.subr.bf16.mxu0 0
    %1049 = vmatpush1.bf16.msra.mxu0 0
    %1050 = vmatprep.subr.bf16.mxu0 0
    %1051 = vmatpush1.bf16.msra.mxu0 0
    %1052 = vmatprep.subr.bf16.mxu0 0
    %1053 = vmatpush1.bf16.msra.mxu0 0
    %1054 = vmatprep.subr.bf16.mxu0 0
    %1055 = vmatpush1.bf16.msra.mxu0 0
    %1056 = vmatprep.subr.bf16.mxu0 0
    %1057 = vmatpush1.bf16.msra.mxu0 0
    %1058 = vmatprep.subr.bf16.mxu0 0
    %1059 = vmatpush1.bf16.msra.mxu0 0
    %1060 = vmatprep.subr.bf16.mxu0 0
    %1061 = vmatpush1.bf16.msra.mxu0 0
    %1062 = vmatprep.subr.bf16.mxu0 0
    %1063 = vmatpush1.bf16.msra.mxu0 0
    %1064 = vmatprep.subr.bf16.mxu0 0
    %1065 = vmatpush1.bf16.msra.mxu0 0
    %1066 = vmatprep.subr.bf16.mxu0 0
    %1067 = vmatpush1.bf16.msra.mxu0 0
    %1068 = vmatprep.subr.bf16.mxu0 0
    %1069 = vmatpush1.bf16.msra.mxu0 0
    %1070 = vmatprep.subr.bf16.mxu0 0
    %1071 = vmatpush1.bf16.msra.mxu0 0
    %1072 = vmatprep.subr.bf16.mxu0 0
    %1073 = vmatpush1.bf16.msra.mxu0 0
    %1074 = vmatprep.mubr.bf16.mxu0 0
    %1075 = vmatmul.mubr.bf16.gmra.mrb[0].mxu0 %v1040
    %v1076 = vpop.f32.mrb[0].mxu0
    %v1077 = vadd.f32 %v1025, %v1076
    %v1078 = vpop.f32.mrb[0].mxu0
    %v1079 = vpop.f32.mrb[0].mxu0
    %v1080 = vadd.f32 %v1025, %v1079
    %v1081 = vpop.f32.mrb[0].mxu0
    %1082 = vdwg.mxu0
    %v1083 = vmul.f32 %v1077, %v1077
    %v1084 = vmul.f32 %v1080, %v1080
    %v1085 = vmul.f32 %v1077, %v1083
    %v1086 = vmul.f32 %v1080, %v1084
    %v1087 = vmul.f32 %v1085, 0.044715
    %v1088 = vmul.f32 %v1086, 0.044715
    %v1089 = vadd.f32 %v1077, %v1087
    %v1090 = vadd.f32 %v1080, %v1088
    %v1091 = vmul.f32 %v1089, 0.7978846
    %v1092 = vmul.f32 %v1090, 0.7978846
    %v1093 = vtanh.pop %v1091
    %v1094 = vtanh.pop %v1092
    %v1095 = vadd.f32 %v1093, 1.0
    %v1096 = vadd.f32 %v1094, 1.0
    %v1097 = vmul.f32 %v1095, 0.5
    %v1098 = vmul.f32 %v1096, 0.5
    %v1099 = vmul.f32 %v1077, %v1097
    %v1100 = vmul.f32 %v1080, %v1098
    %v1101 = vld [vmem:[%s22] sm:$0xf]
    %v1102 = vld [vmem:[%s22 + $0x4] sm:$0xf]
    %v1103 = vld [vmem:[%s22 + $0x8] sm:$0xf]
    %v1104 = vld [vmem:[%s22 + $0xc] sm:$0xf]
    %v1105 = vld [vmem:[%s22 + $0x10] sm:$0xf]
    %v1106 = vld [vmem:[%s22 + $0x14] sm:$0xf]
    %v1107 = vld [vmem:[%s22 + $0x18] sm:$0xf]
    %v1108 = vld [vmem:[%s22 + $0x1c] sm:$0xf]
    %v1109 = vld [vmem:[%s22 + $0x20] sm:$0xf]
    %v1110 = vld [vmem:[%s22 + $0x24] sm:$0xf]
    %v1111 = vld [vmem:[%s22 + $0x28] sm:$0xf]
    %v1112 = vld [vmem:[%s22 + $0x2c] sm:$0xf]
    %v1113 = vld [vmem:[%s22 + $0x30] sm:$0xf]
    %v1114 = vld [vmem:[%s22 + $0x34] sm:$0xf]
    %v1115 = vld [vmem:[%s22 + $0x38] sm:$0xf]
    %v1116 = vld [vmem:[%s22 + $0x3c] sm:$0xf]
    %v1117 = vld [vmem:[%s23] sm:$0x1]
    %v1118 = vpack.c.bf16 %v1100, %v1099
    %v1120 = vlaneseq
    %v1121 = vshrl.u32 %v1120, 7
    %v1122 = vsub.s32 0, %v1121
    %v1123 = vrot.slane %v1117, %v1122
    %v1141 = vunpack.c.l.b16 %v1101
    %v1142 = vunpack.c.l.b16 %v1102
    %v1143 = vunpack.c.l.b16 %v1103
    %v1144 = vunpack.c.l.b16 %v1104
    %v1145 = vunpack.c.l.b16 %v1105
    %v1146 = vunpack.c.l.b16 %v1106
    %v1147 = vunpack.c.l.b16 %v1107
    %v1148 = vunpack.c.l.b16 %v1108
    %v1149 = vunpack.c.l.b16 %v1109
    %v1150 = vunpack.c.l.b16 %v1110
    %v1151 = vunpack.c.l.b16 %v1111
    %v1152 = vunpack.c.l.b16 %v1112
    %v1153 = vunpack.c.l.b16 %v1113
    %v1154 = vunpack.c.l.b16 %v1114
    %v1155 = vunpack.c.l.b16 %v1115
    %v1156 = vunpack.c.l.b16 %v1116
    %v1157 = vpack.c.b16 %v1142, %v1141
    %v1158 = vpack.c.b16 %v1144, %v1143
    %v1159 = vpack.c.b16 %v1146, %v1145
    %v1160 = vpack.c.b16 %v1148, %v1147
    %v1161 = vpack.c.b16 %v1150, %v1149
    %v1162 = vpack.c.b16 %v1152, %v1151
    %v1163 = vpack.c.b16 %v1154, %v1153
    %v1164 = vpack.c.b16 %v1156, %v1155
    %1173 = vmatprep.subr.bf16.mxu0 0
    %1174 = vmatpush1.bf16.msra.mxu0 %v1157
    %1175 = vmatprep.subr.bf16.mxu0 0
    %1176 = vmatpush1.bf16.msra.mxu0 %v1158
    %1177 = vmatprep.subr.bf16.mxu0 0
    %1178 = vmatpush1.bf16.msra.mxu0 %v1159
    %1179 = vmatprep.subr.bf16.mxu0 0
    %1180 = vmatpush1.bf16.msra.mxu0 %v1160
    %1181 = vmatprep.subr.bf16.mxu0 0
    %1182 = vmatpush1.bf16.msra.mxu0 %v1161
    %1183 = vmatprep.subr.bf16.mxu0 0
    %1184 = vmatpush1.bf16.msra.mxu0 %v1162
    %1185 = vmatprep.subr.bf16.mxu0 0
    %1186 = vmatpush1.bf16.msra.mxu0 %v1163
    %1187 = vmatprep.subr.bf16.mxu0 0
    %1188 = vmatpush1.bf16.msra.mxu0 %v1164
    %1189 = vmatprep.subr.bf16.mxu0 0
    %1190 = vmatpush1.bf16.msra.mxu0 0
    %1191 = vmatprep.subr.bf16.mxu0 0
    %1192 = vmatpush1.bf16.msra.mxu0 0
    %1193 = vmatprep.subr.bf16.mxu0 0
    %1194 = vmatpush1.bf16.msra.mxu0 0
    %1195 = vmatprep.subr.bf16.mxu0 0
    %1196 = vmatpush1.bf16.msra.mxu0 0
    %1197 = vmatprep.subr.bf16.mxu0 0
    %1198 = vmatpush1.bf16.msra.mxu0 0
    %1199 = vmatprep.subr.bf16.mxu0 0
    %1200 = vmatpush1.bf16.msra.mxu0 0
    %1201 = vmatprep.subr.bf16.mxu0 0
    %1202 = vmatpush1.bf16.msra.mxu0 0
    %1203 = vmatprep.subr.bf16.mxu0 0
    %1204 = vmatpush1.bf16.msra.mxu0 0
    %1205 = vmatprep.mubr.bf16.mxu0 0
    %1206 = vmatmul.mubr.bf16.gmra.mrb[0].mxu0 %v1118
    %v1207 = vpop.f32.mrb[0].mxu0
    %v1208 = vadd.f32 %v1123, %v1207
    %v1209 = vpop.f32.mrb[0].mxu0
    %v1210 = vpop.f32.mrb[0].mxu0
    %v1211 = vadd.f32 %v1123, %v1210
    %v1212 = vpop.f32.mrb[0].mxu0
    %1213 = vdwg.mxu0
    %v1214 = vadd.f32 %v969, %v1208
    %v1215 = vadd.f32 %v970, %v1211
    %s1216 = scalar_lea.vmem %s11, 1
    %v1217 = vld [vmem:[%s1216] sm:$0x1]
    %s1218 = scalar_lea.vmem %s12, 1
    %v1219 = vld [vmem:[%s1218] sm:$0x1]
    %v1220 = vsel %vm371, %v1214, 0.0
    %1221 = vadd.xlane.f32.xlu0 %v1220
    %v1222 = vpop.xlane.xlu0 %1221
    %v1223 = vsel %vm371, %v1215, 0.0
    %1224 = vadd.xlane.f32.xlu0 %v1223
    %v1225 = vpop.xlane.xlu0 %1224
    %v1226 = vmul.f32 %v1222, %v378
    %v1227 = vmul.f32 %v1225, %v378
    %v1228 = vsub.f32 %v1214, %v1226
    %v1229 = vsub.f32 %v1215, %v1227
    %v1230 = vmul.f32 %v1228, %v1228
    %v1231 = vmul.f32 %v1229, %v1229
    %v1232 = vsel %vm371, %v1230, 0.0
    %1233 = vadd.xlane.f32.xlu0 %v1232
    %v1234 = vpop.xlane.xlu0 %1233
    %v1235 = vsel %vm371, %v1231, 0.0
    %1236 = vadd.xlane.f32.xlu0 %v1235
    %v1237 = vpop.xlane.xlu0 %1236
    %v1238 = vmul.f32 %v1234, %v378
    %v1239 = vmul.f32 %v1237, %v378
    %v1240 = vadd.f32 %v1238, 1e-05
    %v1241 = vadd.f32 %v1239, 1e-05
    %v1242 = vrsqrt.pop %v1240
    %v1243 = vrsqrt.pop %v1241
    %v1244 = vmul.f32 %v1228, %v1242
    %v1245 = vmul.f32 %v1229, %v1243
    %v1247 = vlaneseq
    %v1248 = vshrl.u32 %v1247, 7
    %v1249 = vsub.s32 0, %v1248
    %v1250 = vrot.slane %v1217, %v1249
    %v1252 = vmul.f32 %v1244, %v1250
    %v1253 = vmul.f32 %v1245, %v1250
    %v1255 = vlaneseq
    %v1256 = vshrl.u32 %v1255, 7
    %v1257 = vsub.s32 0, %v1256
    %v1258 = vrot.slane %v1219, %v1257
    %v1260 = vadd.f32 %v1252, %v1258
    %v1261 = vadd.f32 %v1253, %v1258
    %s1262 = scalar_lea.vmem %s13, 16
    %v1263 = vld [vmem:[%s1262] sm:$0xf]
    %v1264 = vld [vmem:[%s1262 + $0x4] sm:$0xf]
    %v1265 = vld [vmem:[%s1262 + $0x8] sm:$0xf]
    %v1266 = vld [vmem:[%s1262 + $0xc] sm:$0xf]
    %v1267 = vpack.c.bf16 %v1261, %v1260
    %v1272 = vunpack.c.l.b16 %v1263
    %v1273 = vunpack.c.l.b16 %v1264
    %v1274 = vunpack.c.l.b16 %v1265
    %v1275 = vunpack.c.l.b16 %v1266
    %v1276 = vpack.c.b16 %v1273, %v1272
    %v1277 = vpack.c.b16 %v1275, %v1274
    %v1281 = vsel %vm371, %v1267, 0
    %1283 = vmatprep.subr.bf16.mxu0 0
    %1284 = vmatpush1.bf16.msra.mxu0 %v1276
    %1285 = vmatprep.subr.bf16.mxu0 0
    %1286 = vmatpush1.bf16.msra.mxu0 %v1277
    %1287 = vmatprep.subr.bf16.mxu0 0
    %1288 = vmatpush1.bf16.msra.mxu0 0
    %1289 = vmatprep.subr.bf16.mxu0 0
    %1290 = vmatpush1.bf16.msra.mxu0 0
    %1291 = vmatprep.subr.bf16.mxu0 0
    %1292 = vmatpush1.bf16.msra.mxu0 0
    %1293 = vmatprep.subr.bf16.mxu0 0
    %1294 = vmatpush1.bf16.msra.mxu0 0
    %1295 = vmatprep.subr.bf16.mxu0 0
    %1296 = vmatpush1.bf16.msra.mxu0 0
    %1297 = vmatprep.subr.bf16.mxu0 0
    %1298 = vmatpush1.bf16.msra.mxu0 0
    %1299 = vmatprep.subr.bf16.mxu0 0
    %1300 = vmatpush1.bf16.msra.mxu0 0
    %1301 = vmatprep.subr.bf16.mxu0 0
    %1302 = vmatpush1.bf16.msra.mxu0 0
    %1303 = vmatprep.subr.bf16.mxu0 0
    %1304 = vmatpush1.bf16.msra.mxu0 0
    %1305 = vmatprep.subr.bf16.mxu0 0
    %1306 = vmatpush1.bf16.msra.mxu0 0
    %1307 = vmatprep.subr.bf16.mxu0 0
    %1308 = vmatpush1.bf16.msra.mxu0 0
    %1309 = vmatprep.subr.bf16.mxu0 0
    %1310 = vmatpush1.bf16.msra.mxu0 0
    %1311 = vmatprep.subr.bf16.mxu0 0
    %1312 = vmatpush1.bf16.msra.mxu0 0
    %1313 = vmatprep.subr.bf16.mxu0 0
    %1314 = vmatpush1.bf16.msra.mxu0 0
    %1315 = vmatprep.mubr.bf16.mxu0 0
    %1316 = vmatmul.mubr.bf16.gmra.mrb[0].mxu0 %v1281
    %v1317 = vpop.f32.mrb[0].mxu0
    %v1318 = vadd.f32 0.0, %v1317
    %v1319 = vpop.f32.mrb[0].mxu0
    %v1320 = vpop.f32.mrb[0].mxu0
    %v1321 = vadd.f32 0.0, %v1320
    %v1322 = vpop.f32.mrb[0].mxu0
    %1323 = vdwg.mxu0
    %v1324 = vpack.c.bf16 %v1318, %v1318
    %v1325 = vpack.c.bf16 %v1321, %v1321
    %s1326 = scalar_lea.vmem %s14, 16
    %v1327 = vld [vmem:[%s1326] sm:$0xf]
    %v1328 = vld [vmem:[%s1326 + $0x4] sm:$0xf]
    %v1329 = vld [vmem:[%s1326 + $0x8] sm:$0xf]
    %v1330 = vld [vmem:[%s1326 + $0xc] sm:$0xf]
    %v1335 = vunpack.c.l.b16 %v1327
    %v1336 = vunpack.c.l.b16 %v1328
    %v1337 = vunpack.c.l.b16 %v1329
    %v1338 = vunpack.c.l.b16 %v1330
    %v1339 = vpack.c.b16 %v1336, %v1335
    %v1340 = vpack.c.b16 %v1338, %v1337
    %1343 = vmatprep.subr.bf16.mxu0 0
    %1344 = vmatpush1.bf16.msra.mxu0 %v1339
    %1345 = vmatprep.subr.bf16.mxu0 0
    %1346 = vmatpush1.bf16.msra.mxu0 %v1340
    %1347 = vmatprep.subr.bf16.mxu0 0
    %1348 = vmatpush1.bf16.msra.mxu0 0
    %1349 = vmatprep.subr.bf16.mxu0 0
    %1350 = vmatpush1.bf16.msra.mxu0 0
    %1351 = vmatprep.subr.bf16.mxu0 0
    %1352 = vmatpush1.bf16.msra.mxu0 0
    %1353 = vmatprep.subr.bf16.mxu0 0
    %1354 = vmatpush1.bf16.msra.mxu0 0
    %1355 = vmatprep.subr.bf16.mxu0 0
    %1356 = vmatpush1.bf16.msra.mxu0 0
    %1357 = vmatprep.subr.bf16.mxu0 0
    %1358 = vmatpush1.bf16.msra.mxu0 0
    %1359 = vmatprep.subr.bf16.mxu0 0
    %1360 = vmatpush1.bf16.msra.mxu0 0
    %1361 = vmatprep.subr.bf16.mxu0 0
    %1362 = vmatpush1.bf16.msra.mxu0 0
    %1363 = vmatprep.subr.bf16.mxu0 0
    %1364 = vmatpush1.bf16.msra.mxu0 0
    %1365 = vmatprep.subr.bf16.mxu0 0
    %1366 = vmatpush1.bf16.msra.mxu0 0
    %1367 = vmatprep.subr.bf16.mxu0 0
    %1368 = vmatpush1.bf16.msra.mxu0 0
    %1369 = vmatprep.subr.bf16.mxu0 0
    %1370 = vmatpush1.bf16.msra.mxu0 0
    %1371 = vmatprep.subr.bf16.mxu0 0
    %1372 = vmatpush1.bf16.msra.mxu0 0
    %1373 = vmatprep.subr.bf16.mxu0 0
    %1374 = vmatpush1.bf16.msra.mxu0 0
    %1375 = vmatprep.mubr.bf16.mxu0 0
    %1376 = vmatmul.mubr.bf16.gmra.mrb[0].mxu0 %v1281
    %v1377 = vpop.f32.mrb[0].mxu0
    %v1378 = vadd.f32 0.0, %v1377
    %v1379 = vpop.f32.mrb[0].mxu0
    %v1380 = vpop.f32.mrb[0].mxu0
    %v1381 = vadd.f32 0.0, %v1380
    %v1382 = vpop.f32.mrb[0].mxu0
    %1383 = vdwg.mxu0
    %s1384 = scalar_lea.vmem %s15, 16
    %v1385 = vld [vmem:[%s1384] sm:$0xf]
    %v1386 = vld [vmem:[%s1384 + $0x4] sm:$0xf]
    %v1387 = vld [vmem:[%s1384 + $0x8] sm:$0xf]
    %v1388 = vld [vmem:[%s1384 + $0xc] sm:$0xf]
    %v1393 = vunpack.c.l.b16 %v1385
    %v1394 = vunpack.c.l.b16 %v1386
    %v1395 = vunpack.c.l.b16 %v1387
    %v1396 = vunpack.c.l.b16 %v1388
    %v1397 = vpack.c.b16 %v1394, %v1393
    %v1398 = vpack.c.b16 %v1396, %v1395
    %1401 = vmatprep.subr.bf16.mxu0 0
    %1402 = vmatpush1.bf16.msra.mxu0 %v1397
    %1403 = vmatprep.subr.bf16.mxu0 0
    %1404 = vmatpush1.bf16.msra.mxu0 %v1398
    %1405 = vmatprep.subr.bf16.mxu0 0
    %1406 = vmatpush1.bf16.msra.mxu0 0
    %1407 = vmatprep.subr.bf16.mxu0 0
    %1408 = vmatpush1.bf16.msra.mxu0 0
    %1409 = vmatprep.subr.bf16.mxu0 0
    %1410 = vmatpush1.bf16.msra.mxu0 0
    %1411 = vmatprep.subr.bf16.mxu0 0
    %1412 = vmatpush1.bf16.msra.mxu0 0
    %1413 = vmatprep.subr.bf16.mxu0 0
    %1414 = vmatpush1.bf16.msra.mxu0 0
    %1415 = vmatprep.subr.bf16.mxu0 0
    %1416 = vmatpush1.bf16.msra.mxu0 0
    %1417 = vmatprep.subr.bf16.mxu0 0
    %1418 = vmatpush1.bf16.msra.mxu0 0
    %1419 = vmatprep.subr.bf16.mxu0 0
    %1420 = vmatpush1.bf16.msra.mxu0 0
    %1421 = vmatprep.subr.bf16.mxu0 0
    %1422 = vmatpush1.bf16.msra.mxu0 0
    %1423 = vmatprep.subr.bf16.mxu0 0
    %1424 = vmatpush1.bf16.msra.mxu0 0
    %1425 = vmatprep.subr.bf16.mxu0 0
    %1426 = vmatpush1.bf16.msra.mxu0 0
    %1427 = vmatprep.subr.bf16.mxu0 0
    %1428 = vmatpush1.bf16.msra.mxu0 0
    %1429 = vmatprep.subr.bf16.mxu0 0
    %1430 = vmatpush1.bf16.msra.mxu0 0
    %1431 = vmatprep.subr.bf16.mxu0 0
    %1432 = vmatpush1.bf16.msra.mxu0 0
    %1433 = vmatprep.mubr.bf16.mxu0 0
    %1434 = vmatmul.mubr.bf16.gmra.mrb[0].mxu0 %v1281
    %v1435 = vpop.f32.mrb[0].mxu0
    %v1436 = vadd.f32 0.0, %v1435
    %v1437 = vpop.f32.mrb[0].mxu0
    %v1438 = vpop.f32.mrb[0].mxu0
    %v1439 = vadd.f32 0.0, %v1438
    %v1440 = vpop.f32.mrb[0].mxu0
    %1441 = vdwg.mxu0
    %v1442 = vmul.f32 %v1378, %v361
    %v1443 = vmul.f32 %v1378, %v362
    %v1444 = vmul.f32 %v1378, %v363
    %v1445 = vmul.f32 %v1378, %v364
    %v1446 = vmul.f32 %v1381, %v361
    %v1447 = vmul.f32 %v1381, %v362
    %v1448 = vmul.f32 %v1381, %v363
    %v1449 = vmul.f32 %v1381, %v364
    %v1450 = vpack.c.bf16 %v1443, %v1442
    %v1451 = vpack.c.bf16 %v1445, %v1444
    %v1452 = vpack.c.bf16 %v1447, %v1446
    %v1453 = vpack.c.bf16 %v1449, %v1448
    %v1454 = vmul.f32 %v1436, %v361
    %v1455 = vmul.f32 %v1436, %v362
    %v1456 = vmul.f32 %v1436, %v363
    %v1457 = vmul.f32 %v1436, %v364
    %v1458 = vmul.f32 %v1439, %v361
    %v1459 = vmul.f32 %v1439, %v362
    %v1460 = vmul.f32 %v1439, %v363
    %v1461 = vmul.f32 %v1439, %v364
    %v1462 = vpack.c.bf16 %v1455, %v1454
    %v1463 = vpack.c.bf16 %v1457, %v1456
    %v1464 = vpack.c.bf16 %v1459, %v1458
    %v1465 = vpack.c.bf16 %v1461, %v1460
    %v1467 = vsel %vm371, %v1324, 0
    %v1470 = vsel %vm371, %v1450, 0
    %v1473 = vsel %vm371, %v1451, 0
    %1475 = vmatprep.subr.bf16.mxu0 0
    %1476 = vmatpush1.bf16.xpose.msra.mxu0 %v1470
    %1477 = vmatprep.subr.bf16.mxu0 0
    %1478 = vmatpush1.bf16.xpose.msra.mxu0 %v1473
    %1479 = vmatprep.subr.bf16.mxu0 0
    %1480 = vmatpush1.bf16.xpose.msra.mxu0 0
    %1481 = vmatprep.subr.bf16.mxu0 0
    %1482 = vmatpush1.bf16.xpose.msra.mxu0 0
    %1483 = vmatprep.subr.bf16.mxu0 0
    %1484 = vmatpush1.bf16.xpose.msra.mxu0 0
    %1485 = vmatprep.subr.bf16.mxu0 0
    %1486 = vmatpush1.bf16.xpose.msra.mxu0 0
    %1487 = vmatprep.subr.bf16.mxu0 0
    %1488 = vmatpush1.bf16.xpose.msra.mxu0 0
    %1489 = vmatprep.subr.bf16.mxu0 0
    %1490 = vmatpush1.bf16.xpose.msra.mxu0 0
    %1491 = vmatprep.subr.bf16.mxu0 0
    %1492 = vmatpush1.bf16.xpose.msra.mxu0 0
    %1493 = vmatprep.subr.bf16.mxu0 0
    %1494 = vmatpush1.bf16.xpose.msra.mxu0 0
    %1495 = vmatprep.subr.bf16.mxu0 0
    %1496 = vmatpush1.bf16.xpose.msra.mxu0 0
    %1497 = vmatprep.subr.bf16.mxu0 0
    %1498 = vmatpush1.bf16.xpose.msra.mxu0 0
    %1499 = vmatprep.subr.bf16.mxu0 0
    %1500 = vmatpush1.bf16.xpose.msra.mxu0 0
    %1501 = vmatprep.subr.bf16.mxu0 0
    %1502 = vmatpush1.bf16.xpose.msra.mxu0 0
    %1503 = vmatprep.subr.bf16.mxu0 0
    %1504 = vmatpush1.bf16.xpose.msra.mxu0 0
    %1505 = vmatprep.subr.bf16.mxu0 0
    %1506 = vmatpush1.bf16.xpose.msra.mxu0 0
    %1507 = vmatprep.mubr.bf16.mxu0 0
    %1508 = vmatmul.mubr.bf16.gmra.mrb[0].mxu0 %v1467
    %v1509 = vpop.f32.mrb[0].mxu0
    %v1510 = vadd.f32 0.0, %v1509
    %v1511 = vpop.f32.mrb[0].mxu0
    %v1512 = vpop.f32.mrb[0].mxu0
    %v1513 = vpop.f32.mrb[0].mxu0
    %1514 = vdwg.mxu0
    %v1516 = vsel %vm371, %v1325, 0
    %v1519 = vsel %vm371, %v1452, 0
    %v1522 = vsel %vm371, %v1453, 0
    %1524 = vmatprep.subr.bf16.mxu0 0
    %1525 = vmatpush1.bf16.xpose.msra.mxu0 %v1519
    %1526 = vmatprep.subr.bf16.mxu0 0
    %1527 = vmatpush1.bf16.xpose.msra.mxu0 %v1522
    %1528 = vmatprep.subr.bf16.mxu0 0
    %1529 = vmatpush1.bf16.xpose.msra.mxu0 0
    %1530 = vmatprep.subr.bf16.mxu0 0
    %1531 = vmatpush1.bf16.xpose.msra.mxu0 0
    %1532 = vmatprep.subr.bf16.mxu0 0
    %1533 = vmatpush1.bf16.xpose.msra.mxu0 0
    %1534 = vmatprep.subr.bf16.mxu0 0
    %1535 = vmatpush1.bf16.xpose.msra.mxu0 0
    %1536 = vmatprep.subr.bf16.mxu0 0
    %1537 = vmatpush1.bf16.xpose.msra.mxu0 0
    %1538 = vmatprep.subr.bf16.mxu0 0
    %1539 = vmatpush1.bf16.xpose.msra.mxu0 0
    %1540 = vmatprep.subr.bf16.mxu0 0
    %1541 = vmatpush1.bf16.xpose.msra.mxu0 0
    %1542 = vmatprep.subr.bf16.mxu0 0
    %1543 = vmatpush1.bf16.xpose.msra.mxu0 0
    %1544 = vmatprep.subr.bf16.mxu0 0
    %1545 = vmatpush1.bf16.xpose.msra.mxu0 0
    %1546 = vmatprep.subr.bf16.mxu0 0
    %1547 = vmatpush1.bf16.xpose.msra.mxu0 0
    %1548 = vmatprep.subr.bf16.mxu0 0
    %1549 = vmatpush1.bf16.xpose.msra.mxu0 0
    %1550 = vmatprep.subr.bf16.mxu0 0
    %1551 = vmatpush1.bf16.xpose.msra.mxu0 0
    %1552 = vmatprep.subr.bf16.mxu0 0
    %1553 = vmatpush1.bf16.xpose.msra.mxu0 0
    %1554 = vmatprep.subr.bf16.mxu0 0
    %1555 = vmatpush1.bf16.xpose.msra.mxu0 0
    %1556 = vmatprep.mubr.bf16.mxu0 0
    %1557 = vmatmul.mubr.bf16.gmra.mrb[0].mxu0 %v1516
    %v1558 = vpop.f32.mrb[0].mxu0
    %v1559 = vadd.f32 0.0, %v1558
    %v1560 = vpop.f32.mrb[0].mxu0
    %v1561 = vpop.f32.mrb[0].mxu0
    %v1562 = vpop.f32.mrb[0].mxu0
    %1563 = vdwg.mxu0
    %v1564 = vsel %vm359, %v1510, -1e+09
    %v1565 = vsel %vm360, %v1559, -1e+09
    %v1566 = vsel %vm371, %v1564, -inf
    %1567 = vmax.xlane.f32.xlu0 %v1566
    %v1568 = vpop.xlane.xlu0 %1567
    %v1569 = vsel %vm371, %v1565, -inf
    %1570 = vmax.xlane.f32.xlu0 %v1569
    %v1571 = vpop.xlane.xlu0 %1570
    %v1572 = vsub.f32 %v1564, %v1568
    %v1573 = vsub.f32 %v1565, %v1571
    %v1574 = vmul.f32 %v1572, 1.442695
    %v1575 = vpow.pop %v1574
    %v1576 = vmul.f32 %v1573, 1.442695
    %v1577 = vpow.pop %v1576
    %v1579 = vsel %vm371, %v1575, 0
    %v1582 = vsel %vm371, %v1577, 0
    %1584 = vmatprep.subr.mxu0 0.0
    %1585 = vmatpush1.msra.mxu0 %v365
    %1586 = vmatprep.subr.mxu0 0.0
    %1587 = vmatpush1.msra.mxu0 %v366
    %1588 = vmatprep.subr.mxu0 0.0
    %1589 = vmatpush1.msra.mxu0 %v367
    %1590 = vmatprep.subr.mxu0 0.0
    %1591 = vmatpush1.msra.mxu0 %v368
    %1592 = vmatprep.subr.mxu0 0.0
    %1593 = vmatpush1.msra.mxu0 0.0
    %1594 = vmatprep.subr.mxu0 0.0
    %1595 = vmatpush1.msra.mxu0 0.0
    %1596 = vmatprep.subr.mxu0 0.0
    %1597 = vmatpush1.msra.mxu0 0.0
    %1598 = vmatprep.subr.mxu0 0.0
    %1599 = vmatpush1.msra.mxu0 0.0
    %1600 = vmatprep.subr.mxu0 0.0
    %1601 = vmatpush1.msra.mxu0 0.0
    %1602 = vmatprep.subr.mxu0 0.0
    %1603 = vmatpush1.msra.mxu0 0.0
    %1604 = vmatprep.subr.mxu0 0.0
    %1605 = vmatpush1.msra.mxu0 0.0
    %1606 = vmatprep.subr.mxu0 0.0
    %1607 = vmatpush1.msra.mxu0 0.0
    %1608 = vmatprep.subr.mxu0 0.0
    %1609 = vmatpush1.msra.mxu0 0.0
    %1610 = vmatprep.subr.mxu0 0.0
    %1611 = vmatpush1.msra.mxu0 0.0
    %1612 = vmatprep.subr.mxu0 0.0
    %1613 = vmatpush1.msra.mxu0 0.0
    %1614 = vmatprep.subr.mxu0 0.0
    %1615 = vmatpush1.msra.mxu0 0.0
    %1616 = vmatprep.subr.mxu0 0.0
    %1617 = vmatpush1.msra.mxu0 0.0
    %1618 = vmatprep.subr.mxu0 0.0
    %1619 = vmatpush1.msra.mxu0 0.0
    %1620 = vmatprep.subr.mxu0 0.0
    %1621 = vmatpush1.msra.mxu0 0.0
    %1622 = vmatprep.subr.mxu0 0.0
    %1623 = vmatpush1.msra.mxu0 0.0
    %1624 = vmatprep.subr.mxu0 0.0
    %1625 = vmatpush1.msra.mxu0 0.0
    %1626 = vmatprep.subr.mxu0 0.0
    %1627 = vmatpush1.msra.mxu0 0.0
    %1628 = vmatprep.subr.mxu0 0.0
    %1629 = vmatpush1.msra.mxu0 0.0
    %1630 = vmatprep.subr.mxu0 0.0
    %1631 = vmatpush1.msra.mxu0 0.0
    %1632 = vmatprep.subr.mxu0 0.0
    %1633 = vmatpush1.msra.mxu0 0.0
    %1634 = vmatprep.subr.mxu0 0.0
    %1635 = vmatpush1.msra.mxu0 0.0
    %1636 = vmatprep.subr.mxu0 0.0
    %1637 = vmatpush1.msra.mxu0 0.0
    %1638 = vmatprep.subr.mxu0 0.0
    %1639 = vmatpush1.msra.mxu0 0.0
    %1640 = vmatprep.subr.mxu0 0.0
    %1641 = vmatpush1.msra.mxu0 0.0
    %1642 = vmatprep.subr.mxu0 0.0
    %1643 = vmatpush1.msra.mxu0 0.0
    %1644 = vmatprep.subr.mxu0 0.0
    %1645 = vmatpush1.msra.mxu0 0.0
    %1646 = vmatprep.subr.mxu0 0.0
    %1647 = vmatpush1.msra.mxu0 0.0
    %1648 = vmatprep.mubr.f32.mxu0 0.0
    %1649 = vmatmul.mubr.f32.gmra.mrb[0].mxu0 %v1579
    %v1650 = vpop.f32.mrb[0].mxu0
    %v1651 = vadd.f32 0.0, %v1650
    %v1652 = vpop.f32.mrb[0].mxu0
    %1653 = vmatprep.mubr.f32.mxu0 0.0
    %1654 = vmatmul.mubr.f32.gmra.mrb[0].mxu0 %v1582
    %v1655 = vpop.f32.mrb[0].mxu0
    %v1656 = vadd.f32 0.0, %v1655
    %v1657 = vpop.f32.mrb[0].mxu0
    %1658 = vdwg.mxu0
    %v1659 = vrcp.pop %v1651
    %v1660 = vrcp.pop %v1656
    %v1661 = vmul.f32 %v1575, %v1659
    %v1662 = vmul.f32 %v1577, %v1660
    %v1663 = vpack.c.bf16 %v1661, %v1661
    %v1664 = vpack.c.bf16 %v1662, %v1662
    %v1666 = vsel %vm371, %v1663, 0
    %1668 = vmatprep.subr.bf16.mxu0 0
    %1669 = vmatpush1.bf16.msra.mxu0 %v1462
    %1670 = vmatprep.subr.bf16.mxu0 0
    %1671 = vmatpush1.bf16.msra.mxu0 %v1463
    %1672 = vmatprep.subr.bf16.mxu0 0
    %1673 = vmatpush1.bf16.msra.mxu0 0
    %1674 = vmatprep.subr.bf16.mxu0 0
    %1675 = vmatpush1.bf16.msra.mxu0 0
    %1676 = vmatprep.subr.bf16.mxu0 0
    %1677 = vmatpush1.bf16.msra.mxu0 0
    %1678 = vmatprep.subr.bf16.mxu0 0
    %1679 = vmatpush1.bf16.msra.mxu0 0
    %1680 = vmatprep.subr.bf16.mxu0 0
    %1681 = vmatpush1.bf16.msra.mxu0 0
    %1682 = vmatprep.subr.bf16.mxu0 0
    %1683 = vmatpush1.bf16.msra.mxu0 0
    %1684 = vmatprep.subr.bf16.mxu0 0
    %1685 = vmatpush1.bf16.msra.mxu0 0
    %1686 = vmatprep.subr.bf16.mxu0 0
    %1687 = vmatpush1.bf16.msra.mxu0 0
    %1688 = vmatprep.subr.bf16.mxu0 0
    %1689 = vmatpush1.bf16.msra.mxu0 0
    %1690 = vmatprep.subr.bf16.mxu0 0
    %1691 = vmatpush1.bf16.msra.mxu0 0
    %1692 = vmatprep.subr.bf16.mxu0 0
    %1693 = vmatpush1.bf16.msra.mxu0 0
    %1694 = vmatprep.subr.bf16.mxu0 0
    %1695 = vmatpush1.bf16.msra.mxu0 0
    %1696 = vmatprep.subr.bf16.mxu0 0
    %1697 = vmatpush1.bf16.msra.mxu0 0
    %1698 = vmatprep.subr.bf16.mxu0 0
    %1699 = vmatpush1.bf16.msra.mxu0 0
    %1700 = vmatprep.mubr.bf16.mxu0 0
    %1701 = vmatmul.mubr.bf16.gmra.mrb[0].mxu0 %v1666
    %v1702 = vpop.f32.mrb[0].mxu0
    %v1703 = vadd.f32 0.0, %v1702
    %v1704 = vpop.f32.mrb[0].mxu0
    %v1705 = vpop.f32.mrb[0].mxu0
    %v1706 = vpop.f32.mrb[0].mxu0
    %1707 = vdwg.mxu0
    %v1709 = vsel %vm371, %v1664, 0
    %1711 = vmatprep.subr.bf16.mxu0 0
    %1712 = vmatpush1.bf16.msra.mxu0 %v1464
    %1713 = vmatprep.subr.bf16.mxu0 0
    %1714 = vmatpush1.bf16.msra.mxu0 %v1465
    %1715 = vmatprep.subr.bf16.mxu0 0
    %1716 = vmatpush1.bf16.msra.mxu0 0
    %1717 = vmatprep.subr.bf16.mxu0 0
    %1718 = vmatpush1.bf16.msra.mxu0 0
    %1719 = vmatprep.subr.bf16.mxu0 0
    %1720 = vmatpush1.bf16.msra.mxu0 0
    %1721 = vmatprep.subr.bf16.mxu0 0
    %1722 = vmatpush1.bf16.msra.mxu0 0
    %1723 = vmatprep.subr.bf16.mxu0 0
    %1724 = vmatpush1.bf16.msra.mxu0 0
    %1725 = vmatprep.subr.bf16.mxu0 0
    %1726 = vmatpush1.bf16.msra.mxu0 0
    %1727 = vmatprep.subr.bf16.mxu0 0
    %1728 = vmatpush1.bf16.msra.mxu0 0
    %1729 = vmatprep.subr.bf16.mxu0 0
    %1730 = vmatpush1.bf16.msra.mxu0 0
    %1731 = vmatprep.subr.bf16.mxu0 0
    %1732 = vmatpush1.bf16.msra.mxu0 0
    %1733 = vmatprep.subr.bf16.mxu0 0
    %1734 = vmatpush1.bf16.msra.mxu0 0
    %1735 = vmatprep.subr.bf16.mxu0 0
    %1736 = vmatpush1.bf16.msra.mxu0 0
    %1737 = vmatprep.subr.bf16.mxu0 0
    %1738 = vmatpush1.bf16.msra.mxu0 0
    %1739 = vmatprep.subr.bf16.mxu0 0
    %1740 = vmatpush1.bf16.msra.mxu0 0
    %1741 = vmatprep.subr.bf16.mxu0 0
    %1742 = vmatpush1.bf16.msra.mxu0 0
    %1743 = vmatprep.mubr.bf16.mxu0 0
    %1744 = vmatmul.mubr.bf16.gmra.mrb[0].mxu0 %v1709
    %v1745 = vpop.f32.mrb[0].mxu0
    %v1746 = vadd.f32 0.0, %v1745
    %v1747 = vpop.f32.mrb[0].mxu0
    %v1748 = vpop.f32.mrb[0].mxu0
    %v1749 = vpop.f32.mrb[0].mxu0
    %1750 = vdwg.mxu0
    %s1751 = scalar_lea.vmem %s16, 16
    %v1752 = vld [vmem:[%s1751] sm:$0xf]
    %v1753 = vld [vmem:[%s1751 + $0x4] sm:$0xf]
    %v1754 = vld [vmem:[%s1751 + $0x8] sm:$0xf]
    %v1755 = vld [vmem:[%s1751 + $0xc] sm:$0xf]
    %s1756 = scalar_lea.vmem %s17, 1
    %v1757 = vld [vmem:[%s1756] sm:$0x1]
    %v1758 = vpack.c.bf16 %v1746, %v1703
    %v1760 = vlaneseq
    %v1761 = vshrl.u32 %v1760, 7
    %v1762 = vsub.s32 0, %v1761
    %v1763 = vrot.slane %v1757, %v1762
    %v1769 = vunpack.c.l.b16 %v1752
    %v1770 = vunpack.c.l.b16 %v1753
    %v1771 = vunpack.c.l.b16 %v1754
    %v1772 = vunpack.c.l.b16 %v1755
    %v1773 = vpack.c.b16 %v1770, %v1769
    %v1774 = vpack.c.b16 %v1772, %v1771
    %v1778 = vsel %vm371, %v1758, 0
    %1780 = vmatprep.subr.bf16.mxu0 0
    %1781 = vmatpush1.bf16.msra.mxu0 %v1773
    %1782 = vmatprep.subr.bf16.mxu0 0
    %1783 = vmatpush1.bf16.msra.mxu0 %v1774
    %1784 = vmatprep.subr.bf16.mxu0 0
    %1785 = vmatpush1.bf16.msra.mxu0 0
    %1786 = vmatprep.subr.bf16.mxu0 0
    %1787 = vmatpush1.bf16.msra.mxu0 0
    %1788 = vmatprep.subr.bf16.mxu0 0
    %1789 = vmatpush1.bf16.msra.mxu0 0
    %1790 = vmatprep.subr.bf16.mxu0 0
    %1791 = vmatpush1.bf16.msra.mxu0 0
    %1792 = vmatprep.subr.bf16.mxu0 0
    %1793 = vmatpush1.bf16.msra.mxu0 0
    %1794 = vmatprep.subr.bf16.mxu0 0
    %1795 = vmatpush1.bf16.msra.mxu0 0
    %1796 = vmatprep.subr.bf16.mxu0 0
    %1797 = vmatpush1.bf16.msra.mxu0 0
    %1798 = vmatprep.subr.bf16.mxu0 0
    %1799 = vmatpush1.bf16.msra.mxu0 0
    %1800 = vmatprep.subr.bf16.mxu0 0
    %1801 = vmatpush1.bf16.msra.mxu0 0
    %1802 = vmatprep.subr.bf16.mxu0 0
    %1803 = vmatpush1.bf16.msra.mxu0 0
    %1804 = vmatprep.subr.bf16.mxu0 0
    %1805 = vmatpush1.bf16.msra.mxu0 0
    %1806 = vmatprep.subr.bf16.mxu0 0
    %1807 = vmatpush1.bf16.msra.mxu0 0
    %1808 = vmatprep.subr.bf16.mxu0 0
    %1809 = vmatpush1.bf16.msra.mxu0 0
    %1810 = vmatprep.subr.bf16.mxu0 0
    %1811 = vmatpush1.bf16.msra.mxu0 0
    %1812 = vmatprep.mubr.bf16.mxu0 0
    %1813 = vmatmul.mubr.bf16.gmra.mrb[0].mxu0 %v1778
    %v1814 = vpop.f32.mrb[0].mxu0
    %v1815 = vadd.f32 %v1763, %v1814
    %v1816 = vpop.f32.mrb[0].mxu0
    %v1817 = vpop.f32.mrb[0].mxu0
    %v1818 = vadd.f32 %v1763, %v1817
    %v1819 = vpop.f32.mrb[0].mxu0
    %1820 = vdwg.mxu0
    %v1821 = vadd.f32 %v1214, %v1815
    %v1822 = vadd.f32 %v1215, %v1818
    %s1823 = scalar_lea.vmem %s18, 1
    %v1824 = vld [vmem:[%s1823] sm:$0x1]
    %s1825 = scalar_lea.vmem %s19, 1
    %v1826 = vld [vmem:[%s1825] sm:$0x1]
    %v1827 = vsel %vm371, %v1821, 0.0
    %1828 = vadd.xlane.f32.xlu0 %v1827
    %v1829 = vpop.xlane.xlu0 %1828
    %v1830 = vsel %vm371, %v1822, 0.0
    %1831 = vadd.xlane.f32.xlu0 %v1830
    %v1832 = vpop.xlane.xlu0 %1831
    %v1833 = vmul.f32 %v1829, %v378
    %v1834 = vmul.f32 %v1832, %v378
    %v1835 = vsub.f32 %v1821, %v1833
    %v1836 = vsub.f32 %v1822, %v1834
    %v1837 = vmul.f32 %v1835, %v1835
    %v1838 = vmul.f32 %v1836, %v1836
    %v1839 = vsel %vm371, %v1837, 0.0
    %1840 = vadd.xlane.f32.xlu0 %v1839
    %v1841 = vpop.xlane.xlu0 %1840
    %v1842 = vsel %vm371, %v1838, 0.0
    %1843 = vadd.xlane.f32.xlu0 %v1842
    %v1844 = vpop.xlane.xlu0 %1843
    %v1845 = vmul.f32 %v1841, %v378
    %v1846 = vmul.f32 %v1844, %v378
    %v1847 = vadd.f32 %v1845, 1e-05
    %v1848 = vadd.f32 %v1846, 1e-05
    %v1849 = vrsqrt.pop %v1847
    %v1850 = vrsqrt.pop %v1848
    %v1851 = vmul.f32 %v1835, %v1849
    %v1852 = vmul.f32 %v1836, %v1850
    %v1854 = vlaneseq
    %v1855 = vshrl.u32 %v1854, 7
    %v1856 = vsub.s32 0, %v1855
    %v1857 = vrot.slane %v1824, %v1856
    %v1859 = vmul.f32 %v1851, %v1857
    %v1860 = vmul.f32 %v1852, %v1857
    %v1862 = vlaneseq
    %v1863 = vshrl.u32 %v1862, 7
    %v1864 = vsub.s32 0, %v1863
    %v1865 = vrot.slane %v1826, %v1864
    %v1867 = vadd.f32 %v1859, %v1865
    %v1868 = vadd.f32 %v1860, %v1865
    %s1869 = scalar_lea.vmem %s20, 16
    %v1870 = vld [vmem:[%s1869] sm:$0xf]
    %v1871 = vld [vmem:[%s1869 + $0x4] sm:$0xf]
    %v1872 = vld [vmem:[%s1869 + $0x8] sm:$0xf]
    %v1873 = vld [vmem:[%s1869 + $0xc] sm:$0xf]
    %s1874 = scalar_lea.vmem %s21, 1
    %v1875 = vld [vmem:[%s1874] sm:$0x1]
    %v1876 = vpack.c.bf16 %v1868, %v1867
    %v1878 = vlaneseq
    %v1879 = vshrl.u32 %v1878, 7
    %v1880 = vsub.s32 0, %v1879
    %v1881 = vrot.slane %v1875, %v1880
    %v1887 = vunpack.c.l.b16 %v1870
    %v1888 = vunpack.c.l.b16 %v1871
    %v1889 = vunpack.c.l.b16 %v1872
    %v1890 = vunpack.c.l.b16 %v1873
    %v1891 = vpack.c.b16 %v1888, %v1887
    %v1892 = vpack.c.b16 %v1890, %v1889
    %v1896 = vsel %vm371, %v1876, 0
    %1898 = vmatprep.subr.bf16.mxu0 0
    %1899 = vmatpush1.bf16.msra.mxu0 %v1891
    %1900 = vmatprep.subr.bf16.mxu0 0
    %1901 = vmatpush1.bf16.msra.mxu0 %v1892
    %1902 = vmatprep.subr.bf16.mxu0 0
    %1903 = vmatpush1.bf16.msra.mxu0 0
    %1904 = vmatprep.subr.bf16.mxu0 0
    %1905 = vmatpush1.bf16.msra.mxu0 0
    %1906 = vmatprep.subr.bf16.mxu0 0
    %1907 = vmatpush1.bf16.msra.mxu0 0
    %1908 = vmatprep.subr.bf16.mxu0 0
    %1909 = vmatpush1.bf16.msra.mxu0 0
    %1910 = vmatprep.subr.bf16.mxu0 0
    %1911 = vmatpush1.bf16.msra.mxu0 0
    %1912 = vmatprep.subr.bf16.mxu0 0
    %1913 = vmatpush1.bf16.msra.mxu0 0
    %1914 = vmatprep.subr.bf16.mxu0 0
    %1915 = vmatpush1.bf16.msra.mxu0 0
    %1916 = vmatprep.subr.bf16.mxu0 0
    %1917 = vmatpush1.bf16.msra.mxu0 0
    %1918 = vmatprep.subr.bf16.mxu0 0
    %1919 = vmatpush1.bf16.msra.mxu0 0
    %1920 = vmatprep.subr.bf16.mxu0 0
    %1921 = vmatpush1.bf16.msra.mxu0 0
    %1922 = vmatprep.subr.bf16.mxu0 0
    %1923 = vmatpush1.bf16.msra.mxu0 0
    %1924 = vmatprep.subr.bf16.mxu0 0
    %1925 = vmatpush1.bf16.msra.mxu0 0
    %1926 = vmatprep.subr.bf16.mxu0 0
    %1927 = vmatpush1.bf16.msra.mxu0 0
    %1928 = vmatprep.subr.bf16.mxu0 0
    %1929 = vmatpush1.bf16.msra.mxu0 0
    %1930 = vmatprep.mubr.bf16.mxu0 0
    %1931 = vmatmul.mubr.bf16.gmra.mrb[0].mxu0 %v1896
    %v1932 = vpop.f32.mrb[0].mxu0
    %v1933 = vadd.f32 %v1881, %v1932
    %v1934 = vpop.f32.mrb[0].mxu0
    %v1935 = vpop.f32.mrb[0].mxu0
    %v1936 = vadd.f32 %v1881, %v1935
    %v1937 = vpop.f32.mrb[0].mxu0
    %1938 = vdwg.mxu0
    %v1939 = vmul.f32 %v1933, %v1933
    %v1940 = vmul.f32 %v1936, %v1936
    %v1941 = vmul.f32 %v1933, %v1939
    %v1942 = vmul.f32 %v1936, %v1940
    %v1943 = vmul.f32 %v1941, 0.044715
    %v1944 = vmul.f32 %v1942, 0.044715
    %v1945 = vadd.f32 %v1933, %v1943
    %v1946 = vadd.f32 %v1936, %v1944
    %v1947 = vmul.f32 %v1945, 0.7978846
    %v1948 = vmul.f32 %v1946, 0.7978846
    %v1949 = vtanh.pop %v1947
    %v1950 = vtanh.pop %v1948
    %v1951 = vadd.f32 %v1949, 1.0
    %v1952 = vadd.f32 %v1950, 1.0
    %v1953 = vmul.f32 %v1951, 0.5
    %v1954 = vmul.f32 %v1952, 0.5
    %v1955 = vmul.f32 %v1933, %v1953
    %v1956 = vmul.f32 %v1936, %v1954
    %s1957 = scalar_lea.vmem %s22, 64
    %v1958 = vld [vmem:[%s1957] sm:$0xf]
    %v1959 = vld [vmem:[%s1957 + $0x4] sm:$0xf]
    %v1960 = vld [vmem:[%s1957 + $0x8] sm:$0xf]
    %v1961 = vld [vmem:[%s1957 + $0xc] sm:$0xf]
    %v1962 = vld [vmem:[%s1957 + $0x10] sm:$0xf]
    %v1963 = vld [vmem:[%s1957 + $0x14] sm:$0xf]
    %v1964 = vld [vmem:[%s1957 + $0x18] sm:$0xf]
    %v1965 = vld [vmem:[%s1957 + $0x1c] sm:$0xf]
    %v1966 = vld [vmem:[%s1957 + $0x20] sm:$0xf]
    %v1967 = vld [vmem:[%s1957 + $0x24] sm:$0xf]
    %v1968 = vld [vmem:[%s1957 + $0x28] sm:$0xf]
    %v1969 = vld [vmem:[%s1957 + $0x2c] sm:$0xf]
    %v1970 = vld [vmem:[%s1957 + $0x30] sm:$0xf]
    %v1971 = vld [vmem:[%s1957 + $0x34] sm:$0xf]
    %v1972 = vld [vmem:[%s1957 + $0x38] sm:$0xf]
    %v1973 = vld [vmem:[%s1957 + $0x3c] sm:$0xf]
    %s1974 = scalar_lea.vmem %s23, 1
    %v1975 = vld [vmem:[%s1974] sm:$0x1]
    %v1976 = vpack.c.bf16 %v1956, %v1955
    %v1978 = vlaneseq
    %v1979 = vshrl.u32 %v1978, 7
    %v1980 = vsub.s32 0, %v1979
    %v1981 = vrot.slane %v1975, %v1980
    %v1999 = vunpack.c.l.b16 %v1958
    %v2000 = vunpack.c.l.b16 %v1959
    %v2001 = vunpack.c.l.b16 %v1960
    %v2002 = vunpack.c.l.b16 %v1961
    %v2003 = vunpack.c.l.b16 %v1962
    %v2004 = vunpack.c.l.b16 %v1963
    %v2005 = vunpack.c.l.b16 %v1964
    %v2006 = vunpack.c.l.b16 %v1965
    %v2007 = vunpack.c.l.b16 %v1966
    %v2008 = vunpack.c.l.b16 %v1967
    %v2009 = vunpack.c.l.b16 %v1968
    %v2010 = vunpack.c.l.b16 %v1969
    %v2011 = vunpack.c.l.b16 %v1970
    %v2012 = vunpack.c.l.b16 %v1971
    %v2013 = vunpack.c.l.b16 %v1972
    %v2014 = vunpack.c.l.b16 %v1973
    %v2015 = vpack.c.b16 %v2000, %v1999
    %v2016 = vpack.c.b16 %v2002, %v2001
    %v2017 = vpack.c.b16 %v2004, %v2003
    %v2018 = vpack.c.b16 %v2006, %v2005
    %v2019 = vpack.c.b16 %v2008, %v2007
    %v2020 = vpack.c.b16 %v2010, %v2009
    %v2021 = vpack.c.b16 %v2012, %v2011
    %v2022 = vpack.c.b16 %v2014, %v2013
    %2031 = vmatprep.subr.bf16.mxu0 0
    %2032 = vmatpush1.bf16.msra.mxu0 %v2015
    %2033 = vmatprep.subr.bf16.mxu0 0
    %2034 = vmatpush1.bf16.msra.mxu0 %v2016
    %2035 = vmatprep.subr.bf16.mxu0 0
    %2036 = vmatpush1.bf16.msra.mxu0 %v2017
    %2037 = vmatprep.subr.bf16.mxu0 0
    %2038 = vmatpush1.bf16.msra.mxu0 %v2018
    %2039 = vmatprep.subr.bf16.mxu0 0
    %2040 = vmatpush1.bf16.msra.mxu0 %v2019
    %2041 = vmatprep.subr.bf16.mxu0 0
    %2042 = vmatpush1.bf16.msra.mxu0 %v2020
    %2043 = vmatprep.subr.bf16.mxu0 0
    %2044 = vmatpush1.bf16.msra.mxu0 %v2021
    %2045 = vmatprep.subr.bf16.mxu0 0
    %2046 = vmatpush1.bf16.msra.mxu0 %v2022
    %2047 = vmatprep.subr.bf16.mxu0 0
    %2048 = vmatpush1.bf16.msra.mxu0 0
    %2049 = vmatprep.subr.bf16.mxu0 0
    %2050 = vmatpush1.bf16.msra.mxu0 0
    %2051 = vmatprep.subr.bf16.mxu0 0
    %2052 = vmatpush1.bf16.msra.mxu0 0
    %2053 = vmatprep.subr.bf16.mxu0 0
    %2054 = vmatpush1.bf16.msra.mxu0 0
    %2055 = vmatprep.subr.bf16.mxu0 0
    %2056 = vmatpush1.bf16.msra.mxu0 0
    %2057 = vmatprep.subr.bf16.mxu0 0
    %2058 = vmatpush1.bf16.msra.mxu0 0
    %2059 = vmatprep.subr.bf16.mxu0 0
    %2060 = vmatpush1.bf16.msra.mxu0 0
    %2061 = vmatprep.subr.bf16.mxu0 0
    %2062 = vmatpush1.bf16.msra.mxu0 0
    %2063 = vmatprep.mubr.bf16.mxu0 0
    %2064 = vmatmul.mubr.bf16.gmra.mrb[0].mxu0 %v1976
    %v2065 = vpop.f32.mrb[0].mxu0
    %v2066 = vadd.f32 %v1981, %v2065
    %v2067 = vpop.f32.mrb[0].mxu0
    %v2068 = vpop.f32.mrb[0].mxu0
    %v2069 = vadd.f32 %v1981, %v2068
    %v2070 = vpop.f32.mrb[0].mxu0
    %2071 = vdwg.mxu0
    %v2072 = vadd.f32 %v1821, %v2066
    %v2073 = vadd.f32 %v1822, %v2069
    %v2074 = vld [vmem:[%s24] sm:$0x1]
    %v2075 = vld [vmem:[%s25] sm:$0x1]
    %v2076 = vsel %vm371, %v2072, 0.0
    %2077 = vadd.xlane.f32.xlu0 %v2076
    %v2078 = vpop.xlane.xlu0 %2077
    %v2079 = vsel %vm371, %v2073, 0.0
    %2080 = vadd.xlane.f32.xlu0 %v2079
    %v2081 = vpop.xlane.xlu0 %2080
    %v2082 = vmul.f32 %v2078, %v378
    %v2083 = vmul.f32 %v2081, %v378
    %v2084 = vsub.f32 %v2072, %v2082
    %v2085 = vsub.f32 %v2073, %v2083
    %v2086 = vmul.f32 %v2084, %v2084
    %v2087 = vmul.f32 %v2085, %v2085
    %v2088 = vsel %vm371, %v2086, 0.0
    %2089 = vadd.xlane.f32.xlu0 %v2088
    %v2090 = vpop.xlane.xlu0 %2089
    %v2091 = vsel %vm371, %v2087, 0.0
    %2092 = vadd.xlane.f32.xlu0 %v2091
    %v2093 = vpop.xlane.xlu0 %2092
    %v2094 = vmul.f32 %v2090, %v378
    %v2095 = vmul.f32 %v2093, %v378
    %v2096 = vadd.f32 %v2094, 1e-05
    %v2097 = vadd.f32 %v2095, 1e-05
    %v2098 = vrsqrt.pop %v2096
    %v2099 = vrsqrt.pop %v2097
    %v2100 = vmul.f32 %v2084, %v2098
    %v2101 = vmul.f32 %v2085, %v2099
    %v2103 = vlaneseq
    %v2104 = vshrl.u32 %v2103, 7
    %v2105 = vsub.s32 0, %v2104
    %v2106 = vrot.slane %v2074, %v2105
    %v2108 = vmul.f32 %v2100, %v2106
    %v2109 = vmul.f32 %v2101, %v2106
    %v2111 = vlaneseq
    %v2112 = vshrl.u32 %v2111, 7
    %v2113 = vsub.s32 0, %v2112
    %v2114 = vrot.slane %v2075, %v2113
    %v2116 = vadd.f32 %v2108, %v2114
    %v2117 = vadd.f32 %v2109, %v2114
    %2118 = vst.msk [vmem:[#allocation2] sm:$0xff] %vm371, %v2116
    %2119 = vst.msk [vmem:[#allocation2 + $0x8] sm:$0xff] %vm371, %v2117
    // Predicated region
    $region106: #{encoder_forward.1} parent=1 // pred_check
      _
    $region107: #{encoder_forward.1} parent=1 // pred_check_branch
      %2121 = sbr.rel (0) target = $region109
    $region108: #{encoder_forward.1} parent=1 // pred_region
      %s2123 = ssub.s32 256, 256
      %2124 = vsyncadd [#allocation3], %s2123
      %s2125 = sshll.u32 [#allocation2], 4
      %s2126 = int_to_ptr.vmem [resolvable:$true] %s2125
      %2131 = dma.vmem_to_hbm [thread:$0]  %s2126, 256, %s26, [#allocation3], 128, 128, 8
    $region109: #{encoder_forward.1} parent=1 // pred_fallthru
      _
    // Predicated region
    $region110: #{encoder_forward.1} parent=1 // pred_check
      _
    $region111: #{encoder_forward.1} parent=1 // pred_check_branch
      %2133 = sbr.rel (0) target = $region113
    $region112: #{encoder_forward.1} parent=1 // pred_region
      %2134 = dma.done [#allocation3], 256
    $region113: #{encoder_forward.1} parent=1 // pred_fallthru
      _
    %2135 = vsyncpa [#allocation3], 1

</llo_original>
